<compile_context>
chip_gen: v7x
topology: tpu7x:2x2x1
jax: 0.10.0
libtpu: 0.0.40
codegen_flags: <defaults>
</compile_context>

<pallas_src>
import functools
import math

import jax
import jax.numpy as jnp
from jax.experimental import pallas as pl
from jax.experimental.pallas import tpu as pltpu


def _conv_params(in_shape, out_shape, kernel_shape):
    """Stride / padding exactly as computed in Encoder.__init__."""
    sh = in_shape[0] // out_shape[0]
    sw = in_shape[1] // out_shape[1]
    ph = math.ceil(((out_shape[0] - 1) * sh - in_shape[0] + kernel_shape[0]) / 2)
    pw = math.ceil(((out_shape[1] - 1) * sw - in_shape[1] + kernel_shape[1]) / 2)
    return sh, sw, ph, pw


def _gather_matrix(n_in, n_out, ksize, stride, pad):
    """G [ksize*n_out, n_in] with G[k*n_out + o, i] = 1 iff i == stride*o + k - pad
    and 0 <= i < n_in (out-of-range source -> all-zero row == zero padding)."""
    o = jnp.arange(n_out)
    cols = jnp.arange(n_in)
    mats = []
    for k in range(ksize):
        src = stride * o + k - pad                                   # [n_out]
        mats.append((cols[None, :] == src[:, None]).astype(jnp.float32))
    return jnp.concatenate(mats, axis=0)                             # [ksize*n_out, n_in]


def _two_tensorcore_chip():
    """Best-effort detection of 2-TensorCore chips (v7x). Falls back to single-TC."""
    try:
        kind = jax.devices()[0].device_kind.lower()
    except Exception:
        return False
    return "v7" in kind


def _encoder_kernel(x_ref, rhbd_ref, cwt_ref, wflat_ref, o_ref, *,
                    bc, c_in, c_out, h_in, h_out, w_out, kh_sz, kw_sz):
    # x_ref    : [bc, C_in, H_in, W_in]                       (VMEM)
    # rhbd_ref : [bc*C_in*Kh*H_out, bc*C_in*H_in]             (VMEM, block-diag row gather)
    # cwt_ref  : [W_in, Kw*W_out]                             (VMEM, 0/1 col-gather, pre-transposed)
    # wflat_ref: [C_out*C_in*Kh*Kw]                           (SMEM, flat conv weights, OIHW order)
    # o_ref    : [bc, C_out, H_out, W_out]
    w_in = x_ref.shape[-1]

    # Column gather: fold batch chunk AND all input channels into the MXU M dim.
    x2 = x_ref[...].reshape(bc * c_in * h_in, w_in)                   # [bc*C_in*H_in, W_in]
    a = jnp.dot(x2, cwt_ref[...],
                preferred_element_type=jnp.float32)                   # [bc*C_in*H_in, Kw*W_out]

    # Row gather for every (batch, channel) block in ONE matmul (block-diagonal Rh).
    p = jnp.dot(rhbd_ref[...], a,
                preferred_element_type=jnp.float32)                   # [bc*C_in*Kh*H_out, Kw*W_out]

    # Hoist all SMEM scalar weight reads out of the accumulate loops (no per-tap
    # scalar load on the accumulator dependency chain).
    wvals = [wflat_ref[i] for i in range(c_out * c_in * kh_sz * kw_sz)]

    for bi in range(bc):
        accs = [jnp.zeros((h_out, w_out), jnp.float32) for _ in range(c_out)]
        for ci in range(c_in):
            for ikh in range(kh_sz):
                row0 = ((bi * c_in + ci) * kh_sz + ikh) * h_out
                for ikw in range(kw_sz):
                    # Aligned static slice = the strided, zero-padded im2col patch.
                    patch = p[row0:row0 + h_out,
                              ikw * w_out:(ikw + 1) * w_out]          # [H_out, W_out]
                    # Patch materialized once; C_out accumulators kept live (co innermost).
                    for co in range(c_out):
                        wv = wvals[((co * c_in + ci) * kh_sz + ikh) * kw_sz + ikw]
                        accs[co] = accs[co] + wv * patch
        for co in range(c_out):
            o_ref[bi, co, :, :] = accs[co].astype(o_ref.dtype)


def encoder_forward(x, w_conv, in_shape, out_shape, *, num_batch_blocks=None):
    """x: [B, C_in, H_in, W_in] f32, w_conv: [C_out, C_in, Kh, Kw] f32 (bias=False)."""
    b, c_in, h_in, w_in = x.shape
    assert (h_in, w_in) == tuple(in_shape)
    c_out, c_in_w, kh_sz, kw_sz = w_conv.shape
    assert c_in_w == c_in

    sh, sw, ph, pw = _conv_params(in_shape, out_shape, (kh_sz, kw_sz))
    assert ph >= 0 and pw >= 0, "negative padding not supported (not valid for Conv2d)"
    # Actual Conv2d output size (equals out_shape for consistent in/out shapes).
    h_out = (h_in + 2 * ph - kh_sz) // sh + 1
    w_out = (w_in + 2 * pw - kw_sz) // sw + 1

    # Grid blocking over batch: 2 parallel blocks on 2-TC chips (v7x), otherwise fold
    # the whole batch into a single step (v5e/v6e single TensorCore — grid is serial).
    if num_batch_blocks is None:
        num_batch_blocks = 2 if _two_tensorcore_chip() else 1
    nb = math.gcd(b, max(1, num_batch_blocks))
    bc = b // nb

    rh = _gather_matrix(h_in, h_out, kh_sz, sh, ph)                   # [Kh*H_out, H_in]
    cwt = _gather_matrix(w_in, w_out, kw_sz, sw, pw).T                # [W_in, Kw*W_out]
    # Block-diagonal row gather: fuses all bc*C_in per-channel row gathers into one matmul.
    rh_bd = jnp.kron(jnp.eye(bc * c_in, dtype=jnp.float32), rh)       # [bc*C_in*Kh*H_out, bc*C_in*H_in]
    w_flat = w_conv.reshape(-1).astype(jnp.float32)

    kernel = functools.partial(
        _encoder_kernel, bc=bc, c_in=c_in, c_out=c_out,
        h_in=h_in, h_out=h_out, w_out=w_out, kh_sz=kh_sz, kw_sz=kw_sz)

    grid_spec = pltpu.PrefetchScalarGridSpec(
        num_scalar_prefetch=0,
        grid=(nb,),
        in_specs=[
            pl.BlockSpec((bc, c_in, h_in, w_in), lambda i: (i, 0, 0, 0)),
            pl.BlockSpec((bc * c_in * kh_sz * h_out, bc * c_in * h_in),
                         lambda i: (0, 0)),
            pl.BlockSpec((w_in, kw_sz * w_out), lambda i: (0, 0)),
            pl.BlockSpec(memory_space=pltpu.MemorySpace.SMEM),
        ],
        out_specs=pl.BlockSpec((bc, c_out, h_out, w_out), lambda i: (i, 0, 0, 0)),
    )

    return pl.pallas_call(
        kernel,
        out_shape=jax.ShapeDtypeStruct((b, c_out, h_out, w_out), jnp.float32),
        grid_spec=grid_spec,
        compiler_params=pltpu.CompilerParams(
            dimension_semantics=("parallel",)),
    )(x, rh_bd, cwt, w_flat)


def _reference(x, w_conv, in_shape, out_shape):
    """Plain-JAX reference: lax strided conv with the module's stride/padding."""
    sh, sw, ph, pw = _conv_params(in_shape, out_shape, w_conv.shape[2:])
    return jax.lax.conv_general_dilated(
        x, w_conv, window_strides=(sh, sw), padding=[(ph, ph), (pw, pw)],
        dimension_numbers=('NCHW', 'OIHW', 'NCHW'))


if __name__ == "__main__":
    # Small shapes consistent with the module (defaults (721,1440)->(480,960) scaled down).
    # Chosen so stride=(2,2), pad=(1,1), W_out=128 (lane-dense output stores) and
    # H_out=16 (sublane-aligned patch slices).
    B, C_IN, C_OUT = 2, 2, 2
    IN_SHAPE = (32, 256)
    OUT_SHAPE = (16, 128)
    K = (3, 3)

    key = jax.random.PRNGKey(0)
    kx, kw = jax.random.split(key)
    x = jax.random.normal(kx, (B, C_IN) + IN_SHAPE, dtype=jnp.float32)
    w_conv = 0.1 * jax.random.normal(kw, (C_OUT, C_IN) + K, dtype=jnp.float32)

    out = jax.block_until_ready(encoder_forward(x, w_conv, IN_SHAPE, OUT_SHAPE))
    ref = jax.block_until_ready(_reference(x, w_conv, IN_SHAPE, OUT_SHAPE))

    assert out.shape == (B, C_OUT) + OUT_SHAPE
    assert jnp.allclose(out, ref, rtol=1e-4, atol=1e-4), \
        f"max abs err {jnp.max(jnp.abs(out - ref))}"

    print("KERNEL_OK")
</pallas_src>

<mosaic_0001>
module attributes {stable_mosaic.version = 11 : i64} {
  func.func @_encoder_kernel(%arg0: i32, %arg1: memref<2x2x32x256xf32, #tpu.memory_space<vmem>>, %arg2: memref<192x128xf32, #tpu.memory_space<vmem>>, %arg3: memref<256x384xf32, #tpu.memory_space<vmem>>, %arg4: memref<36xf32, #tpu.memory_space<smem>>, %arg5: memref<2x2x16x128xf32, #tpu.memory_space<vmem>>) attributes {dimension_semantics = [#tpu.dimension_semantics<parallel>], iteration_bounds = array<i64: 1>, scalar_prefetch = 0 : i64, scratch_operands = 0 : i64, tpu.core_type = #tpu.core_type<tc>, window_params = [{transform_indices = @transform_0, window_bounds = array<i64: 2, 2, 32, 256>}, {pipeline_mode = #tpu.pipeline_mode<synchronous>, transform_indices = @transform_1, window_bounds = array<i64: 192, 128>}, {pipeline_mode = #tpu.pipeline_mode<synchronous>, transform_indices = @transform_2, window_bounds = array<i64: 256, 384>}, {transform_indices = @transform_3, window_bounds = array<i64: 36>}, {transform_indices = @transform_4, window_bounds = array<i64: 2, 2, 16, 128>}]} {
    %c0 = arith.constant 0 : index
    %c0_0 = arith.constant 0 : index
    %c0_1 = arith.constant 0 : index
    %c0_2 = arith.constant 0 : index
    %0 = vector.load %arg1[%c0, %c0_0, %c0_1, %c0_2] : memref<2x2x32x256xf32, #tpu.memory_space<vmem>>, vector<2x2x32x256xf32>
    %1 = vector.shape_cast %0 : vector<2x2x32x256xf32> to vector<128x256xf32>
    %c0_3 = arith.constant 0 : index
    %c0_4 = arith.constant 0 : index
    %2 = vector.load %arg3[%c0_3, %c0_4] : memref<256x384xf32, #tpu.memory_space<vmem>>, vector<256x384xf32>
    %cst = arith.constant dense<0.000000e+00> : vector<128x384xf32>
    %3 = tpu.matmul %1, %2, %cst {dimension_numbers = #tpu.dot_dimension_numbers<[1], [0], [0], [1], [0, 0, 1, 1], [], []>} : vector<128x256xf32>, vector<256x384xf32>, vector<128x384xf32> -> vector<128x384xf32>
    %c0_5 = arith.constant 0 : index
    %c0_6 = arith.constant 0 : index
    %4 = vector.load %arg2[%c0_5, %c0_6] : memref<192x128xf32, #tpu.memory_space<vmem>>, vector<192x128xf32>
    %cst_7 = arith.constant dense<0.000000e+00> : vector<192x384xf32>
    %5 = tpu.matmul %4, %3, %cst_7 {dimension_numbers = #tpu.dot_dimension_numbers<[1], [0], [0], [1], [0, 0, 1, 1], [], []>} : vector<192x128xf32>, vector<128x384xf32>, vector<192x384xf32> -> vector<192x384xf32>
    %c0_8 = arith.constant 0 : index
    %6 = memref.load %arg4[%c0_8] : memref<36xf32, #tpu.memory_space<smem>>
    %c1 = arith.constant 1 : index
    %7 = memref.load %arg4[%c1] : memref<36xf32, #tpu.memory_space<smem>>
    %c2 = arith.constant 2 : index
    %8 = memref.load %arg4[%c2] : memref<36xf32, #tpu.memory_space<smem>>
    %c3 = arith.constant 3 : index
    %9 = memref.load %arg4[%c3] : memref<36xf32, #tpu.memory_space<smem>>
    %c4 = arith.constant 4 : index
    %10 = memref.load %arg4[%c4] : memref<36xf32, #tpu.memory_space<smem>>
    %c5 = arith.constant 5 : index
    %11 = memref.load %arg4[%c5] : memref<36xf32, #tpu.memory_space<smem>>
    %c6 = arith.constant 6 : index
    %12 = memref.load %arg4[%c6] : memref<36xf32, #tpu.memory_space<smem>>
    %c7 = arith.constant 7 : index
    %13 = memref.load %arg4[%c7] : memref<36xf32, #tpu.memory_space<smem>>
    %c8 = arith.constant 8 : index
    %14 = memref.load %arg4[%c8] : memref<36xf32, #tpu.memory_space<smem>>
    %c9 = arith.constant 9 : index
    %15 = memref.load %arg4[%c9] : memref<36xf32, #tpu.memory_space<smem>>
    %c10 = arith.constant 10 : index
    %16 = memref.load %arg4[%c10] : memref<36xf32, #tpu.memory_space<smem>>
    %c11 = arith.constant 11 : index
    %17 = memref.load %arg4[%c11] : memref<36xf32, #tpu.memory_space<smem>>
    %c12 = arith.constant 12 : index
    %18 = memref.load %arg4[%c12] : memref<36xf32, #tpu.memory_space<smem>>
    %c13 = arith.constant 13 : index
    %19 = memref.load %arg4[%c13] : memref<36xf32, #tpu.memory_space<smem>>
    %c14 = arith.constant 14 : index
    %20 = memref.load %arg4[%c14] : memref<36xf32, #tpu.memory_space<smem>>
    %c15 = arith.constant 15 : index
    %21 = memref.load %arg4[%c15] : memref<36xf32, #tpu.memory_space<smem>>
    %c16 = arith.constant 16 : index
    %22 = memref.load %arg4[%c16] : memref<36xf32, #tpu.memory_space<smem>>
    %c17 = arith.constant 17 : index
    %23 = memref.load %arg4[%c17] : memref<36xf32, #tpu.memory_space<smem>>
    %c18 = arith.constant 18 : index
    %24 = memref.load %arg4[%c18] : memref<36xf32, #tpu.memory_space<smem>>
    %c19 = arith.constant 19 : index
    %25 = memref.load %arg4[%c19] : memref<36xf32, #tpu.memory_space<smem>>
    %c20 = arith.constant 20 : index
    %26 = memref.load %arg4[%c20] : memref<36xf32, #tpu.memory_space<smem>>
    %c21 = arith.constant 21 : index
    %27 = memref.load %arg4[%c21] : memref<36xf32, #tpu.memory_space<smem>>
    %c22 = arith.constant 22 : index
    %28 = memref.load %arg4[%c22] : memref<36xf32, #tpu.memory_space<smem>>
    %c23 = arith.constant 23 : index
    %29 = memref.load %arg4[%c23] : memref<36xf32, #tpu.memory_space<smem>>
    %c24 = arith.constant 24 : index
    %30 = memref.load %arg4[%c24] : memref<36xf32, #tpu.memory_space<smem>>
    %c25 = arith.constant 25 : index
    %31 = memref.load %arg4[%c25] : memref<36xf32, #tpu.memory_space<smem>>
    %c26 = arith.constant 26 : index
    %32 = memref.load %arg4[%c26] : memref<36xf32, #tpu.memory_space<smem>>
    %c27 = arith.constant 27 : index
    %33 = memref.load %arg4[%c27] : memref<36xf32, #tpu.memory_space<smem>>
    %c28 = arith.constant 28 : index
    %34 = memref.load %arg4[%c28] : memref<36xf32, #tpu.memory_space<smem>>
    %c29 = arith.constant 29 : index
    %35 = memref.load %arg4[%c29] : memref<36xf32, #tpu.memory_space<smem>>
    %c30 = arith.constant 30 : index
    %36 = memref.load %arg4[%c30] : memref<36xf32, #tpu.memory_space<smem>>
    %c31 = arith.constant 31 : index
    %37 = memref.load %arg4[%c31] : memref<36xf32, #tpu.memory_space<smem>>
    %c32 = arith.constant 32 : index
    %38 = memref.load %arg4[%c32] : memref<36xf32, #tpu.memory_space<smem>>
    %c33 = arith.constant 33 : index
    %39 = memref.load %arg4[%c33] : memref<36xf32, #tpu.memory_space<smem>>
    %c34 = arith.constant 34 : index
    %40 = memref.load %arg4[%c34] : memref<36xf32, #tpu.memory_space<smem>>
    %c35 = arith.constant 35 : index
    %41 = memref.load %arg4[%c35] : memref<36xf32, #tpu.memory_space<smem>>
    %cst_9 = arith.constant 0.000000e+00 : f32
    %42 = vector.broadcast %cst_9 : f32 to vector<16x128xf32>
    %cst_10 = arith.constant 0.000000e+00 : f32
    %43 = vector.broadcast %cst_10 : f32 to vector<16x128xf32>
    %44 = vector.extract_strided_slice %5 {offsets = [0, 0], sizes = [16, 128], strides = [1, 1]} : vector<192x384xf32> to vector<16x128xf32>
    %45 = vector.broadcast %6 : f32 to vector<16x128xf32>
    %46 = arith.mulf %45, %44 : vector<16x128xf32>
    %47 = arith.addf %42, %46 : vector<16x128xf32>
    %48 = vector.broadcast %24 : f32 to vector<16x128xf32>
    %49 = arith.mulf %48, %44 : vector<16x128xf32>
    %50 = arith.addf %43, %49 : vector<16x128xf32>
    %51 = vector.extract_strided_slice %5 {offsets = [0, 128], sizes = [16, 128], strides = [1, 1]} : vector<192x384xf32> to vector<16x128xf32>
    %52 = vector.broadcast %7 : f32 to vector<16x128xf32>
    %53 = arith.mulf %52, %51 : vector<16x128xf32>
    %54 = arith.addf %47, %53 : vector<16x128xf32>
    %55 = vector.broadcast %25 : f32 to vector<16x128xf32>
    %56 = arith.mulf %55, %51 : vector<16x128xf32>
    %57 = arith.addf %50, %56 : vector<16x128xf32>
    %58 = vector.extract_strided_slice %5 {offsets = [0, 256], sizes = [16, 128], strides = [1, 1]} : vector<192x384xf32> to vector<16x128xf32>
    %59 = vector.broadcast %8 : f32 to vector<16x128xf32>
    %60 = arith.mulf %59, %58 : vector<16x128xf32>
    %61 = arith.addf %54, %60 : vector<16x128xf32>
    %62 = vector.broadcast %26 : f32 to vector<16x128xf32>
    %63 = arith.mulf %62, %58 : vector<16x128xf32>
    %64 = arith.addf %57, %63 : vector<16x128xf32>
    %65 = vector.extract_strided_slice %5 {offsets = [16, 0], sizes = [16, 128], strides = [1, 1]} : vector<192x384xf32> to vector<16x128xf32>
    %66 = vector.broadcast %9 : f32 to vector<16x128xf32>
    %67 = arith.mulf %66, %65 : vector<16x128xf32>
    %68 = arith.addf %61, %67 : vector<16x128xf32>
    %69 = vector.broadcast %27 : f32 to vector<16x128xf32>
    %70 = arith.mulf %69, %65 : vector<16x128xf32>
    %71 = arith.addf %64, %70 : vector<16x128xf32>
    %72 = vector.extract_strided_slice %5 {offsets = [16, 128], sizes = [16, 128], strides = [1, 1]} : vector<192x384xf32> to vector<16x128xf32>
    %73 = vector.broadcast %10 : f32 to vector<16x128xf32>
    %74 = arith.mulf %73, %72 : vector<16x128xf32>
    %75 = arith.addf %68, %74 : vector<16x128xf32>
    %76 = vector.broadcast %28 : f32 to vector<16x128xf32>
    %77 = arith.mulf %76, %72 : vector<16x128xf32>
    %78 = arith.addf %71, %77 : vector<16x128xf32>
    %79 = vector.extract_strided_slice %5 {offsets = [16, 256], sizes = [16, 128], strides = [1, 1]} : vector<192x384xf32> to vector<16x128xf32>
    %80 = vector.broadcast %11 : f32 to vector<16x128xf32>
    %81 = arith.mulf %80, %79 : vector<16x128xf32>
    %82 = arith.addf %75, %81 : vector<16x128xf32>
    %83 = vector.broadcast %29 : f32 to vector<16x128xf32>
    %84 = arith.mulf %83, %79 : vector<16x128xf32>
    %85 = arith.addf %78, %84 : vector<16x128xf32>
    %86 = vector.extract_strided_slice %5 {offsets = [32, 0], sizes = [16, 128], strides = [1, 1]} : vector<192x384xf32> to vector<16x128xf32>
    %87 = vector.broadcast %12 : f32 to vector<16x128xf32>
    %88 = arith.mulf %87, %86 : vector<16x128xf32>
    %89 = arith.addf %82, %88 : vector<16x128xf32>
    %90 = vector.broadcast %30 : f32 to vector<16x128xf32>
    %91 = arith.mulf %90, %86 : vector<16x128xf32>
    %92 = arith.addf %85, %91 : vector<16x128xf32>
    %93 = vector.extract_strided_slice %5 {offsets = [32, 128], sizes = [16, 128], strides = [1, 1]} : vector<192x384xf32> to vector<16x128xf32>
    %94 = vector.broadcast %13 : f32 to vector<16x128xf32>
    %95 = arith.mulf %94, %93 : vector<16x128xf32>
    %96 = arith.addf %89, %95 : vector<16x128xf32>
    %97 = vector.broadcast %31 : f32 to vector<16x128xf32>
    %98 = arith.mulf %97, %93 : vector<16x128xf32>
    %99 = arith.addf %92, %98 : vector<16x128xf32>
    %100 = vector.extract_strided_slice %5 {offsets = [32, 256], sizes = [16, 128], strides = [1, 1]} : vector<192x384xf32> to vector<16x128xf32>
    %101 = vector.broadcast %14 : f32 to vector<16x128xf32>
    %102 = arith.mulf %101, %100 : vector<16x128xf32>
    %103 = arith.addf %96, %102 : vector<16x128xf32>
    %104 = vector.broadcast %32 : f32 to vector<16x128xf32>
    %105 = arith.mulf %104, %100 : vector<16x128xf32>
    %106 = arith.addf %99, %105 : vector<16x128xf32>
    %107 = vector.extract_strided_slice %5 {offsets = [48, 0], sizes = [16, 128], strides = [1, 1]} : vector<192x384xf32> to vector<16x128xf32>
    %108 = vector.broadcast %15 : f32 to vector<16x128xf32>
    %109 = arith.mulf %108, %107 : vector<16x128xf32>
    %110 = arith.addf %103, %109 : vector<16x128xf32>
    %111 = vector.broadcast %33 : f32 to vector<16x128xf32>
    %112 = arith.mulf %111, %107 : vector<16x128xf32>
    %113 = arith.addf %106, %112 : vector<16x128xf32>
    %114 = vector.extract_strided_slice %5 {offsets = [48, 128], sizes = [16, 128], strides = [1, 1]} : vector<192x384xf32> to vector<16x128xf32>
    %115 = vector.broadcast %16 : f32 to vector<16x128xf32>
    %116 = arith.mulf %115, %114 : vector<16x128xf32>
    %117 = arith.addf %110, %116 : vector<16x128xf32>
    %118 = vector.broadcast %34 : f32 to vector<16x128xf32>
    %119 = arith.mulf %118, %114 : vector<16x128xf32>
    %120 = arith.addf %113, %119 : vector<16x128xf32>
    %121 = vector.extract_strided_slice %5 {offsets = [48, 256], sizes = [16, 128], strides = [1, 1]} : vector<192x384xf32> to vector<16x128xf32>
    %122 = vector.broadcast %17 : f32 to vector<16x128xf32>
    %123 = arith.mulf %122, %121 : vector<16x128xf32>
    %124 = arith.addf %117, %123 : vector<16x128xf32>
    %125 = vector.broadcast %35 : f32 to vector<16x128xf32>
    %126 = arith.mulf %125, %121 : vector<16x128xf32>
    %127 = arith.addf %120, %126 : vector<16x128xf32>
    %128 = vector.extract_strided_slice %5 {offsets = [64, 0], sizes = [16, 128], strides = [1, 1]} : vector<192x384xf32> to vector<16x128xf32>
    %129 = vector.broadcast %18 : f32 to vector<16x128xf32>
    %130 = arith.mulf %129, %128 : vector<16x128xf32>
    %131 = arith.addf %124, %130 : vector<16x128xf32>
    %132 = vector.broadcast %36 : f32 to vector<16x128xf32>
    %133 = arith.mulf %132, %128 : vector<16x128xf32>
    %134 = arith.addf %127, %133 : vector<16x128xf32>
    %135 = vector.extract_strided_slice %5 {offsets = [64, 128], sizes = [16, 128], strides = [1, 1]} : vector<192x384xf32> to vector<16x128xf32>
    %136 = vector.broadcast %19 : f32 to vector<16x128xf32>
    %137 = arith.mulf %136, %135 : vector<16x128xf32>
    %138 = arith.addf %131, %137 : vector<16x128xf32>
    %139 = vector.broadcast %37 : f32 to vector<16x128xf32>
    %140 = arith.mulf %139, %135 : vector<16x128xf32>
    %141 = arith.addf %134, %140 : vector<16x128xf32>
    %142 = vector.extract_strided_slice %5 {offsets = [64, 256], sizes = [16, 128], strides = [1, 1]} : vector<192x384xf32> to vector<16x128xf32>
    %143 = vector.broadcast %20 : f32 to vector<16x128xf32>
    %144 = arith.mulf %143, %142 : vector<16x128xf32>
    %145 = arith.addf %138, %144 : vector<16x128xf32>
    %146 = vector.broadcast %38 : f32 to vector<16x128xf32>
    %147 = arith.mulf %146, %142 : vector<16x128xf32>
    %148 = arith.addf %141, %147 : vector<16x128xf32>
    %149 = vector.extract_strided_slice %5 {offsets = [80, 0], sizes = [16, 128], strides = [1, 1]} : vector<192x384xf32> to vector<16x128xf32>
    %150 = vector.broadcast %21 : f32 to vector<16x128xf32>
    %151 = arith.mulf %150, %149 : vector<16x128xf32>
    %152 = arith.addf %145, %151 : vector<16x128xf32>
    %153 = vector.broadcast %39 : f32 to vector<16x128xf32>
    %154 = arith.mulf %153, %149 : vector<16x128xf32>
    %155 = arith.addf %148, %154 : vector<16x128xf32>
    %156 = vector.extract_strided_slice %5 {offsets = [80, 128], sizes = [16, 128], strides = [1, 1]} : vector<192x384xf32> to vector<16x128xf32>
    %157 = vector.broadcast %22 : f32 to vector<16x128xf32>
    %158 = arith.mulf %157, %156 : vector<16x128xf32>
    %159 = arith.addf %152, %158 : vector<16x128xf32>
    %160 = vector.broadcast %40 : f32 to vector<16x128xf32>
    %161 = arith.mulf %160, %156 : vector<16x128xf32>
    %162 = arith.addf %155, %161 : vector<16x128xf32>
    %163 = vector.extract_strided_slice %5 {offsets = [80, 256], sizes = [16, 128], strides = [1, 1]} : vector<192x384xf32> to vector<16x128xf32>
    %164 = vector.broadcast %23 : f32 to vector<16x128xf32>
    %165 = arith.mulf %164, %163 : vector<16x128xf32>
    %166 = arith.addf %159, %165 : vector<16x128xf32>
    %167 = vector.broadcast %41 : f32 to vector<16x128xf32>
    %168 = arith.mulf %167, %163 : vector<16x128xf32>
    %169 = arith.addf %162, %168 : vector<16x128xf32>
    %c0_11 = arith.constant 0 : index
    %c0_12 = arith.constant 0 : index
    %c0_13 = arith.constant 0 : index
    %c0_14 = arith.constant 0 : index
    %170 = vector.load %arg5[%c0_11, %c0_12, %c0_13, %c0_14] : memref<2x2x16x128xf32, #tpu.memory_space<vmem>>, vector<1x1x16x128xf32>
    %171 = vector.shape_cast %170 : vector<1x1x16x128xf32> to vector<16x128xf32>
    %172 = vector.shape_cast %166 : vector<16x128xf32> to vector<1x1x16x128xf32>
    tpu.vector_store %arg5[%c0_11, %c0_12, %c0_13, %c0_14], %172 {strides = array<i32>} : memref<2x2x16x128xf32, #tpu.memory_space<vmem>>, vector<1x1x16x128xf32>,
    %c0_15 = arith.constant 0 : index
    %c1_16 = arith.constant 1 : index
    %c0_17 = arith.constant 0 : index
    %c0_18 = arith.constant 0 : index
    %173 = vector.load %arg5[%c0_15, %c1_16, %c0_17, %c0_18] : memref<2x2x16x128xf32, #tpu.memory_space<vmem>>, vector<1x1x16x128xf32>
    %174 = vector.shape_cast %173 : vector<1x1x16x128xf32> to vector<16x128xf32>
    %175 = vector.shape_cast %169 : vector<16x128xf32> to vector<1x1x16x128xf32>
    tpu.vector_store %arg5[%c0_15, %c1_16, %c0_17, %c0_18], %175 {strides = array<i32>} : memref<2x2x16x128xf32, #tpu.memory_space<vmem>>, vector<1x1x16x128xf32>,
    %cst_19 = arith.constant 0.000000e+00 : f32
    %176 = vector.broadcast %cst_19 : f32 to vector<16x128xf32>
    %cst_20 = arith.constant 0.000000e+00 : f32
    %177 = vector.broadcast %cst_20 : f32 to vector<16x128xf32>
    %178 = vector.extract_strided_slice %5 {offsets = [96, 0], sizes = [16, 128], strides = [1, 1]} : vector<192x384xf32> to vector<16x128xf32>
    %179 = vector.broadcast %6 : f32 to vector<16x128xf32>
    %180 = arith.mulf %179, %178 : vector<16x128xf32>
    %181 = arith.addf %176, %180 : vector<16x128xf32>
    %182 = vector.broadcast %24 : f32 to vector<16x128xf32>
    %183 = arith.mulf %182, %178 : vector<16x128xf32>
    %184 = arith.addf %177, %183 : vector<16x128xf32>
    %185 = vector.extract_strided_slice %5 {offsets = [96, 128], sizes = [16, 128], strides = [1, 1]} : vector<192x384xf32> to vector<16x128xf32>
    %186 = vector.broadcast %7 : f32 to vector<16x128xf32>
    %187 = arith.mulf %186, %185 : vector<16x128xf32>
    %188 = arith.addf %181, %187 : vector<16x128xf32>
    %189 = vector.broadcast %25 : f32 to vector<16x128xf32>
    %190 = arith.mulf %189, %185 : vector<16x128xf32>
    %191 = arith.addf %184, %190 : vector<16x128xf32>
    %192 = vector.extract_strided_slice %5 {offsets = [96, 256], sizes = [16, 128], strides = [1, 1]} : vector<192x384xf32> to vector<16x128xf32>
    %193 = vector.broadcast %8 : f32 to vector<16x128xf32>
    %194 = arith.mulf %193, %192 : vector<16x128xf32>
    %195 = arith.addf %188, %194 : vector<16x128xf32>
    %196 = vector.broadcast %26 : f32 to vector<16x128xf32>
    %197 = arith.mulf %196, %192 : vector<16x128xf32>
    %198 = arith.addf %191, %197 : vector<16x128xf32>
    %199 = vector.extract_strided_slice %5 {offsets = [112, 0], sizes = [16, 128], strides = [1, 1]} : vector<192x384xf32> to vector<16x128xf32>
    %200 = vector.broadcast %9 : f32 to vector<16x128xf32>
    %201 = arith.mulf %200, %199 : vector<16x128xf32>
    %202 = arith.addf %195, %201 : vector<16x128xf32>
    %203 = vector.broadcast %27 : f32 to vector<16x128xf32>
    %204 = arith.mulf %203, %199 : vector<16x128xf32>
    %205 = arith.addf %198, %204 : vector<16x128xf32>
    %206 = vector.extract_strided_slice %5 {offsets = [112, 128], sizes = [16, 128], strides = [1, 1]} : vector<192x384xf32> to vector<16x128xf32>
    %207 = vector.broadcast %10 : f32 to vector<16x128xf32>
    %208 = arith.mulf %207, %206 : vector<16x128xf32>
    %209 = arith.addf %202, %208 : vector<16x128xf32>
    %210 = vector.broadcast %28 : f32 to vector<16x128xf32>
    %211 = arith.mulf %210, %206 : vector<16x128xf32>
    %212 = arith.addf %205, %211 : vector<16x128xf32>
    %213 = vector.extract_strided_slice %5 {offsets = [112, 256], sizes = [16, 128], strides = [1, 1]} : vector<192x384xf32> to vector<16x128xf32>
    %214 = vector.broadcast %11 : f32 to vector<16x128xf32>
    %215 = arith.mulf %214, %213 : vector<16x128xf32>
    %216 = arith.addf %209, %215 : vector<16x128xf32>
    %217 = vector.broadcast %29 : f32 to vector<16x128xf32>
    %218 = arith.mulf %217, %213 : vector<16x128xf32>
    %219 = arith.addf %212, %218 : vector<16x128xf32>
    %220 = vector.extract_strided_slice %5 {offsets = [128, 0], sizes = [16, 128], strides = [1, 1]} : vector<192x384xf32> to vector<16x128xf32>
    %221 = vector.broadcast %12 : f32 to vector<16x128xf32>
    %222 = arith.mulf %221, %220 : vector<16x128xf32>
    %223 = arith.addf %216, %222 : vector<16x128xf32>
    %224 = vector.broadcast %30 : f32 to vector<16x128xf32>
    %225 = arith.mulf %224, %220 : vector<16x128xf32>
    %226 = arith.addf %219, %225 : vector<16x128xf32>
    %227 = vector.extract_strided_slice %5 {offsets = [128, 128], sizes = [16, 128], strides = [1, 1]} : vector<192x384xf32> to vector<16x128xf32>
    %228 = vector.broadcast %13 : f32 to vector<16x128xf32>
    %229 = arith.mulf %228, %227 : vector<16x128xf32>
    %230 = arith.addf %223, %229 : vector<16x128xf32>
    %231 = vector.broadcast %31 : f32 to vector<16x128xf32>
    %232 = arith.mulf %231, %227 : vector<16x128xf32>
    %233 = arith.addf %226, %232 : vector<16x128xf32>
    %234 = vector.extract_strided_slice %5 {offsets = [128, 256], sizes = [16, 128], strides = [1, 1]} : vector<192x384xf32> to vector<16x128xf32>
    %235 = vector.broadcast %14 : f32 to vector<16x128xf32>
    %236 = arith.mulf %235, %234 : vector<16x128xf32>
    %237 = arith.addf %230, %236 : vector<16x128xf32>
    %238 = vector.broadcast %32 : f32 to vector<16x128xf32>
    %239 = arith.mulf %238, %234 : vector<16x128xf32>
    %240 = arith.addf %233, %239 : vector<16x128xf32>
    %241 = vector.extract_strided_slice %5 {offsets = [144, 0], sizes = [16, 128], strides = [1, 1]} : vector<192x384xf32> to vector<16x128xf32>
    %242 = vector.broadcast %15 : f32 to vector<16x128xf32>
    %243 = arith.mulf %242, %241 : vector<16x128xf32>
    %244 = arith.addf %237, %243 : vector<16x128xf32>
    %245 = vector.broadcast %33 : f32 to vector<16x128xf32>
    %246 = arith.mulf %245, %241 : vector<16x128xf32>
    %247 = arith.addf %240, %246 : vector<16x128xf32>
    %248 = vector.extract_strided_slice %5 {offsets = [144, 128], sizes = [16, 128], strides = [1, 1]} : vector<192x384xf32> to vector<16x128xf32>
    %249 = vector.broadcast %16 : f32 to vector<16x128xf32>
    %250 = arith.mulf %249, %248 : vector<16x128xf32>
    %251 = arith.addf %244, %250 : vector<16x128xf32>
    %252 = vector.broadcast %34 : f32 to vector<16x128xf32>
    %253 = arith.mulf %252, %248 : vector<16x128xf32>
    %254 = arith.addf %247, %253 : vector<16x128xf32>
    %255 = vector.extract_strided_slice %5 {offsets = [144, 256], sizes = [16, 128], strides = [1, 1]} : vector<192x384xf32> to vector<16x128xf32>
    %256 = vector.broadcast %17 : f32 to vector<16x128xf32>
    %257 = arith.mulf %256, %255 : vector<16x128xf32>
    %258 = arith.addf %251, %257 : vector<16x128xf32>
    %259 = vector.broadcast %35 : f32 to vector<16x128xf32>
    %260 = arith.mulf %259, %255 : vector<16x128xf32>
    %261 = arith.addf %254, %260 : vector<16x128xf32>
    %262 = vector.extract_strided_slice %5 {offsets = [160, 0], sizes = [16, 128], strides = [1, 1]} : vector<192x384xf32> to vector<16x128xf32>
    %263 = vector.broadcast %18 : f32 to vector<16x128xf32>
    %264 = arith.mulf %263, %262 : vector<16x128xf32>
    %265 = arith.addf %258, %264 : vector<16x128xf32>
    %266 = vector.broadcast %36 : f32 to vector<16x128xf32>
    %267 = arith.mulf %266, %262 : vector<16x128xf32>
    %268 = arith.addf %261, %267 : vector<16x128xf32>
    %269 = vector.extract_strided_slice %5 {offsets = [160, 128], sizes = [16, 128], strides = [1, 1]} : vector<192x384xf32> to vector<16x128xf32>
    %270 = vector.broadcast %19 : f32 to vector<16x128xf32>
    %271 = arith.mulf %270, %269 : vector<16x128xf32>
    %272 = arith.addf %265, %271 : vector<16x128xf32>
    %273 = vector.broadcast %37 : f32 to vector<16x128xf32>
    %274 = arith.mulf %273, %269 : vector<16x128xf32>
    %275 = arith.addf %268, %274 : vector<16x128xf32>
    %276 = vector.extract_strided_slice %5 {offsets = [160, 256], sizes = [16, 128], strides = [1, 1]} : vector<192x384xf32> to vector<16x128xf32>
    %277 = vector.broadcast %20 : f32 to vector<16x128xf32>
    %278 = arith.mulf %277, %276 : vector<16x128xf32>
    %279 = arith.addf %272, %278 : vector<16x128xf32>
    %280 = vector.broadcast %38 : f32 to vector<16x128xf32>
    %281 = arith.mulf %280, %276 : vector<16x128xf32>
    %282 = arith.addf %275, %281 : vector<16x128xf32>
    %283 = vector.extract_strided_slice %5 {offsets = [176, 0], sizes = [16, 128], strides = [1, 1]} : vector<192x384xf32> to vector<16x128xf32>
    %284 = vector.broadcast %21 : f32 to vector<16x128xf32>
    %285 = arith.mulf %284, %283 : vector<16x128xf32>
    %286 = arith.addf %279, %285 : vector<16x128xf32>
    %287 = vector.broadcast %39 : f32 to vector<16x128xf32>
    %288 = arith.mulf %287, %283 : vector<16x128xf32>
    %289 = arith.addf %282, %288 : vector<16x128xf32>
    %290 = vector.extract_strided_slice %5 {offsets = [176, 128], sizes = [16, 128], strides = [1, 1]} : vector<192x384xf32> to vector<16x128xf32>
    %291 = vector.broadcast %22 : f32 to vector<16x128xf32>
    %292 = arith.mulf %291, %290 : vector<16x128xf32>
    %293 = arith.addf %286, %292 : vector<16x128xf32>
    %294 = vector.broadcast %40 : f32 to vector<16x128xf32>
    %295 = arith.mulf %294, %290 : vector<16x128xf32>
    %296 = arith.addf %289, %295 : vector<16x128xf32>
    %297 = vector.extract_strided_slice %5 {offsets = [176, 256], sizes = [16, 128], strides = [1, 1]} : vector<192x384xf32> to vector<16x128xf32>
    %298 = vector.broadcast %23 : f32 to vector<16x128xf32>
    %299 = arith.mulf %298, %297 : vector<16x128xf32>
    %300 = arith.addf %293, %299 : vector<16x128xf32>
    %301 = vector.broadcast %41 : f32 to vector<16x128xf32>
    %302 = arith.mulf %301, %297 : vector<16x128xf32>
    %303 = arith.addf %296, %302 : vector<16x128xf32>
    %c1_21 = arith.constant 1 : index
    %c0_22 = arith.constant 0 : index
    %c0_23 = arith.constant 0 : index
    %c0_24 = arith.constant 0 : index
    %304 = vector.load %arg5[%c1_21, %c0_22, %c0_23, %c0_24] : memref<2x2x16x128xf32, #tpu.memory_space<vmem>>, vector<1x1x16x128xf32>
    %305 = vector.shape_cast %304 : vector<1x1x16x128xf32> to vector<16x128xf32>
    %306 = vector.shape_cast %300 : vector<16x128xf32> to vector<1x1x16x128xf32>
    tpu.vector_store %arg5[%c1_21, %c0_22, %c0_23, %c0_24], %306 {strides = array<i32>} : memref<2x2x16x128xf32, #tpu.memory_space<vmem>>, vector<1x1x16x128xf32>,
    %c1_25 = arith.constant 1 : index
    %c1_26 = arith.constant 1 : index
    %c0_27 = arith.constant 0 : index
    %c0_28 = arith.constant 0 : index
    %307 = vector.load %arg5[%c1_25, %c1_26, %c0_27, %c0_28] : memref<2x2x16x128xf32, #tpu.memory_space<vmem>>, vector<1x1x16x128xf32>
    %308 = vector.shape_cast %307 : vector<1x1x16x128xf32> to vector<16x128xf32>
    %309 = vector.shape_cast %303 : vector<16x128xf32> to vector<1x1x16x128xf32>
    tpu.vector_store %arg5[%c1_25, %c1_26, %c0_27, %c0_28], %309 {strides = array<i32>} : memref<2x2x16x128xf32, #tpu.memory_space<vmem>>, vector<1x1x16x128xf32>,
    return
  }
  func.func @transform_0(%arg0: i32) -> (i32, i32, i32, i32) {
    %c0_i32 = arith.constant 0 : i32
    %c0_i32_0 = arith.constant 0 : i32
    %c0_i32_1 = arith.constant 0 : i32
    %c0_i32_2 = arith.constant 0 : i32
    return %arg0, %c0_i32, %c0_i32_0, %c0_i32_1 : i32, i32, i32, i32
  }
  func.func @transform_1(%arg0: i32) -> (i32, i32) {
    %c0_i32 = arith.constant 0 : i32
    %c0_i32_0 = arith.constant 0 : i32
    %c0_i32_1 = arith.constant 0 : i32
    return %c0_i32, %c0_i32_0 : i32, i32
  }
  func.func @transform_2(%arg0: i32) -> (i32, i32) {
    %c0_i32 = arith.constant 0 : i32
    %c0_i32_0 = arith.constant 0 : i32
    %c0_i32_1 = arith.constant 0 : i32
    return %c0_i32, %c0_i32_0 : i32, i32
  }
  func.func @transform_3(%arg0: i32) -> i32 {
    %c0_i32 = arith.constant 0 : i32
    %c0_i32_0 = arith.constant 0 : i32
    return %c0_i32 : i32
  }
  func.func @transform_4(%arg0: i32) -> (i32, i32, i32, i32) {
    %c0_i32 = arith.constant 0 : i32
    %c0_i32_0 = arith.constant 0 : i32
    %c0_i32_1 = arith.constant 0 : i32
    %c0_i32_2 = arith.constant 0 : i32
    return %arg0, %c0_i32, %c0_i32_0, %c0_i32_1 : i32, i32, i32, i32
  }
}

</mosaic_0001>

<llo_original>
// kernel: tpu_custom_call.1
$region0: #{tpu_custom_call.1}
  #allocation0 [shape = 'u32[]', space=smem, size = 0x4, offset = 0x4, fixed_abs, tag = 'smem constant byte address 0x4 - core index']
  #allocation1 [shape = 'u32[144,128]{1,0:T(1,128)}', space=vmem, size = 0x12000, scoped, tag = 'internal scratch']
  %s0 = inlined_call_operand.hbm [shape: f32[2,2,32,256], index: 0, kind: input, shape index: {}]
  %s1 = inlined_call_operand.hbm [shape: f32[192,128], index: 1, kind: input, shape index: {}]
  %s2 = inlined_call_operand.hbm [shape: f32[256,384], index: 2, kind: input, shape index: {}]
  %s3 = inlined_call_operand.vmem [shape: f32[36], index: 3, kind: input, shape index: {}]
  %s4 = inlined_call_operand.hbm [shape: f32[2,2,16,128], index: 4, kind: output, shape index: {}]
  %s5 = sld [smem:[#allocation0]]
  $region42: #{tpu_custom_call.1} parent=0
    _
  %s7 = ssub.s32 1, %s5
  %s8 = scalar_select 0, %s7, %s5
  $region1: #{tpu_custom_call.1} parent=0
    #allocation2 [shape = 'u8[131072]{0}', space=vmem, size = 0x20000, scoped, tag = 'input window, operand 0, single buffered']
    #allocation3 [shape = 's32[1]{0}', space=sflag, size = 0x4, scoped, tag = 'scoped memory for tpu_custom_call.1']
    #allocation4 [shape = 's32[1]{0}', space=sflag, size = 0x4, scoped, tag = 'scoped memory for tpu_custom_call.1']
    #allocation5 [shape = 's32[1]{0}', space=sflag, size = 0x4, scoped, tag = 'scoped memory for tpu_custom_call.1']
    #allocation6 [shape = 'u8[98304]{0}', space=vmem, size = 0x18000, scoped, tag = 'input window, operand 1, single buffered']
    #allocation7 [shape = 's32[1]{0}', space=sflag, size = 0x4, scoped, tag = 'scoped memory for tpu_custom_call.1']
    #allocation8 [shape = 'u8[393216]{0}', space=vmem, size = 0x60000, scoped, tag = 'input window, operand 2, single buffered']
    #allocation9 [shape = 'u8[512]{0}', space=smem, size = 0x200, scoped, tag = 'input window, operand 3, single buffered']
    #allocation10 [shape = 'u8[32768]{0}', space=vmem, size = 0x8000, scoped, tag = 'output window, operand 0, single buffered']
    %9 = vsyncpa [#allocation3], 0
    %10 = vsyncpa [#allocation7], 0
    %11 = vsyncpa [#allocation5], 0
    %12 = vsyncpa [#allocation4], 0
    // Predicated region
    $region2: #{tpu_custom_call.1} parent=1 // pred_check
      _
    $region3: #{tpu_custom_call.1} parent=1 // pred_check_branch
      %14 = sbr.rel (0) target = $region5
    $region4: #{tpu_custom_call.1} parent=1 // pred_region
      %s16 = ssub.s32 4096, 4096
      %17 = vsyncadd [#allocation3], %s16
      %s18 = sshll.u32 [#allocation2], 4
      %s19 = int_to_ptr.vmem [resolvable:$true] %s18
      %24 = dma.hbm_to_vmem [thread:$0]  %s0, 4096, %s19, [#allocation3], 256, 256, 16
    $region5: #{tpu_custom_call.1} parent=1 // pred_fallthru
      _
    // Predicated region
    $region6: #{tpu_custom_call.1} parent=1 // pred_check
      _
    $region7: #{tpu_custom_call.1} parent=1 // pred_check_branch
      %26 = sbr.rel (0) target = $region9
    $region8: #{tpu_custom_call.1} parent=1 // pred_region
      %s28 = ssub.s32 3072, 3072
      %29 = vsyncadd [#allocation7], %s28
      %s30 = sshll.u32 [#allocation6], 4
      %s31 = int_to_ptr.vmem [resolvable:$true] %s30
      %36 = dma.hbm_to_vmem [thread:$0]  %s1, 3072, %s31, [#allocation7], 128, 128, 8
    $region9: #{tpu_custom_call.1} parent=1 // pred_fallthru
      _
    // Predicated region
    $region10: #{tpu_custom_call.1} parent=1 // pred_check
      _
    $region11: #{tpu_custom_call.1} parent=1 // pred_check_branch
      %38 = sbr.rel (0) target = $region13
    $region12: #{tpu_custom_call.1} parent=1 // pred_region
      %s40 = ssub.s32 12288, 12288
      %41 = vsyncadd [#allocation7], %s40
      %s42 = sshll.u32 [#allocation8], 4
      %s43 = int_to_ptr.vmem [resolvable:$true] %s42
      %48 = dma.hbm_to_vmem [thread:$0]  %s2, 12288, %s43, [#allocation7], 384, 384, 24
    $region13: #{tpu_custom_call.1} parent=1 // pred_fallthru
      _
    // Predicated region
    $region14: #{tpu_custom_call.1} parent=1 // pred_check
      _
    $region15: #{tpu_custom_call.1} parent=1 // pred_check_branch
      %50 = sbr.rel (0) target = $region17
    $region16: #{tpu_custom_call.1} parent=1 // pred_region
      %s52 = ssub.s32 16, 16
      %53 = vsyncadd [#allocation5], %s52
      %s55 = sshll.u32 %s3, 4
      %s56 = int_to_ptr.vmem [resolvable:$true] %s55
      %58 = dma.vmem_to_smem %s56, 16, [#allocation9], [#allocation5]
    $region17: #{tpu_custom_call.1} parent=1 // pred_fallthru
      _
    // Predicated region
    $region18: #{tpu_custom_call.1} parent=1 // pred_check
      _
    $region19: #{tpu_custom_call.1} parent=1 // pred_check_branch
      %60 = sbr.rel (0) target = $region21
    $region20: #{tpu_custom_call.1} parent=1 // pred_region
      %61 = dma.done [#allocation3], 4096
    $region21: #{tpu_custom_call.1} parent=1 // pred_fallthru
      _
    // Predicated region
    $region22: #{tpu_custom_call.1} parent=1 // pred_check
      _
    $region23: #{tpu_custom_call.1} parent=1 // pred_check_branch
      %63 = sbr.rel (0) target = $region25
    $region24: #{tpu_custom_call.1} parent=1 // pred_region
      %64 = dma.done [#allocation7], 3072
    $region25: #{tpu_custom_call.1} parent=1 // pred_fallthru
      _
    // Predicated region
    $region26: #{tpu_custom_call.1} parent=1 // pred_check
      _
    $region27: #{tpu_custom_call.1} parent=1 // pred_check_branch
      %66 = sbr.rel (0) target = $region29
    $region28: #{tpu_custom_call.1} parent=1 // pred_region
      %67 = dma.done [#allocation7], 12288
    $region29: #{tpu_custom_call.1} parent=1 // pred_fallthru
      _
    // Predicated region
    $region30: #{tpu_custom_call.1} parent=1 // pred_check
      _
    $region31: #{tpu_custom_call.1} parent=1 // pred_check_branch
      %69 = sbr.rel (0) target = $region33
    $region32: #{tpu_custom_call.1} parent=1 // pred_region
      %70 = dma.done [#allocation5], 16
    $region33: #{tpu_custom_call.1} parent=1 // pred_fallthru
      _
    %71 = sfence
    %v72 = vld [vmem:[#allocation2] sm:$0xff]
    %v73 = vld [vmem:[#allocation2 + $0x8] sm:$0xff]
    %v74 = vld [vmem:[#allocation2 + $0x10] sm:$0xff]
    %v75 = vld [vmem:[#allocation2 + $0x18] sm:$0xff]
    %v76 = vld [vmem:[#allocation2 + $0x20] sm:$0xff]
    %v77 = vld [vmem:[#allocation2 + $0x28] sm:$0xff]
    %v78 = vld [vmem:[#allocation2 + $0x30] sm:$0xff]
    %v79 = vld [vmem:[#allocation2 + $0x38] sm:$0xff]
    %v80 = vld [vmem:[#allocation2 + $0x40] sm:$0xff]
    %v81 = vld [vmem:[#allocation2 + $0x48] sm:$0xff]
    %v82 = vld [vmem:[#allocation2 + $0x50] sm:$0xff]
    %v83 = vld [vmem:[#allocation2 + $0x58] sm:$0xff]
    %v84 = vld [vmem:[#allocation2 + $0x60] sm:$0xff]
    %v85 = vld [vmem:[#allocation2 + $0x68] sm:$0xff]
    %v86 = vld [vmem:[#allocation2 + $0x70] sm:$0xff]
    %v87 = vld [vmem:[#allocation2 + $0x78] sm:$0xff]
    %v88 = vld [vmem:[#allocation2 + $0x80] sm:$0xff]
    %v89 = vld [vmem:[#allocation2 + $0x88] sm:$0xff]
    %v90 = vld [vmem:[#allocation2 + $0x90] sm:$0xff]
    %v91 = vld [vmem:[#allocation2 + $0x98] sm:$0xff]
    %v92 = vld [vmem:[#allocation2 + $0xa0] sm:$0xff]
    %v93 = vld [vmem:[#allocation2 + $0xa8] sm:$0xff]
    %v94 = vld [vmem:[#allocation2 + $0xb0] sm:$0xff]
    %v95 = vld [vmem:[#allocation2 + $0xb8] sm:$0xff]
    %v96 = vld [vmem:[#allocation2 + $0xc0] sm:$0xff]
    %v97 = vld [vmem:[#allocation2 + $0xc8] sm:$0xff]
    %v98 = vld [vmem:[#allocation2 + $0xd0] sm:$0xff]
    %v99 = vld [vmem:[#allocation2 + $0xd8] sm:$0xff]
    %v100 = vld [vmem:[#allocation2 + $0xe0] sm:$0xff]
    %v101 = vld [vmem:[#allocation2 + $0xe8] sm:$0xff]
    %v102 = vld [vmem:[#allocation2 + $0xf0] sm:$0xff]
    %v103 = vld [vmem:[#allocation2 + $0xf8] sm:$0xff]
    %v104 = vld [vmem:[#allocation8] sm:$0xff]
    %v105 = vld [vmem:[#allocation8 + $0x8] sm:$0xff]
    %v106 = vld [vmem:[#allocation8 + $0x10] sm:$0xff]
    %v107 = vld [vmem:[#allocation8 + $0x18] sm:$0xff]
    %v108 = vld [vmem:[#allocation8 + $0x20] sm:$0xff]
    %v109 = vld [vmem:[#allocation8 + $0x28] sm:$0xff]
    %v110 = vld [vmem:[#allocation8 + $0x30] sm:$0xff]
    %v111 = vld [vmem:[#allocation8 + $0x38] sm:$0xff]
    %v112 = vld [vmem:[#allocation8 + $0x40] sm:$0xff]
    %v113 = vld [vmem:[#allocation8 + $0x48] sm:$0xff]
    %v114 = vld [vmem:[#allocation8 + $0x50] sm:$0xff]
    %v115 = vld [vmem:[#allocation8 + $0x58] sm:$0xff]
    %v116 = vld [vmem:[#allocation8 + $0x60] sm:$0xff]
    %v117 = vld [vmem:[#allocation8 + $0x68] sm:$0xff]
    %v118 = vld [vmem:[#allocation8 + $0x70] sm:$0xff]
    %v119 = vld [vmem:[#allocation8 + $0x78] sm:$0xff]
    %v120 = vld [vmem:[#allocation8 + $0x80] sm:$0xff]
    %v121 = vld [vmem:[#allocation8 + $0x88] sm:$0xff]
    %v122 = vld [vmem:[#allocation8 + $0x90] sm:$0xff]
    %v123 = vld [vmem:[#allocation8 + $0x98] sm:$0xff]
    %v124 = vld [vmem:[#allocation8 + $0xa0] sm:$0xff]
    %v125 = vld [vmem:[#allocation8 + $0xa8] sm:$0xff]
    %v126 = vld [vmem:[#allocation8 + $0xb0] sm:$0xff]
    %v127 = vld [vmem:[#allocation8 + $0xb8] sm:$0xff]
    %v128 = vld [vmem:[#allocation8 + $0xc0] sm:$0xff]
    %v129 = vld [vmem:[#allocation8 + $0xc8] sm:$0xff]
    %v130 = vld [vmem:[#allocation8 + $0xd0] sm:$0xff]
    %v131 = vld [vmem:[#allocation8 + $0xd8] sm:$0xff]
    %v132 = vld [vmem:[#allocation8 + $0xe0] sm:$0xff]
    %v133 = vld [vmem:[#allocation8 + $0xe8] sm:$0xff]
    %v134 = vld [vmem:[#allocation8 + $0xf0] sm:$0xff]
    %v135 = vld [vmem:[#allocation8 + $0xf8] sm:$0xff]
    %v136 = vld [vmem:[#allocation8 + $0x100] sm:$0xff]
    %v137 = vld [vmem:[#allocation8 + $0x108] sm:$0xff]
    %v138 = vld [vmem:[#allocation8 + $0x110] sm:$0xff]
    %v139 = vld [vmem:[#allocation8 + $0x118] sm:$0xff]
    %v140 = vld [vmem:[#allocation8 + $0x120] sm:$0xff]
    %v141 = vld [vmem:[#allocation8 + $0x128] sm:$0xff]
    %v142 = vld [vmem:[#allocation8 + $0x130] sm:$0xff]
    %v143 = vld [vmem:[#allocation8 + $0x138] sm:$0xff]
    %v144 = vld [vmem:[#allocation8 + $0x140] sm:$0xff]
    %v145 = vld [vmem:[#allocation8 + $0x148] sm:$0xff]
    %v146 = vld [vmem:[#allocation8 + $0x150] sm:$0xff]
    %v147 = vld [vmem:[#allocation8 + $0x158] sm:$0xff]
    %v148 = vld [vmem:[#allocation8 + $0x160] sm:$0xff]
    %v149 = vld [vmem:[#allocation8 + $0x168] sm:$0xff]
    %v150 = vld [vmem:[#allocation8 + $0x170] sm:$0xff]
    %v151 = vld [vmem:[#allocation8 + $0x178] sm:$0xff]
    %v152 = vld [vmem:[#allocation8 + $0x180] sm:$0xff]
    %v153 = vld [vmem:[#allocation8 + $0x188] sm:$0xff]
    %v154 = vld [vmem:[#allocation8 + $0x190] sm:$0xff]
    %v155 = vld [vmem:[#allocation8 + $0x198] sm:$0xff]
    %v156 = vld [vmem:[#allocation8 + $0x1a0] sm:$0xff]
    %v157 = vld [vmem:[#allocation8 + $0x1a8] sm:$0xff]
    %v158 = vld [vmem:[#allocation8 + $0x1b0] sm:$0xff]
    %v159 = vld [vmem:[#allocation8 + $0x1b8] sm:$0xff]
    %v160 = vld [vmem:[#allocation8 + $0x1c0] sm:$0xff]
    %v161 = vld [vmem:[#allocation8 + $0x1c8] sm:$0xff]
    %v162 = vld [vmem:[#allocation8 + $0x1d0] sm:$0xff]
    %v163 = vld [vmem:[#allocation8 + $0x1d8] sm:$0xff]
    %v164 = vld [vmem:[#allocation8 + $0x1e0] sm:$0xff]
    %v165 = vld [vmem:[#allocation8 + $0x1e8] sm:$0xff]
    %v166 = vld [vmem:[#allocation8 + $0x1f0] sm:$0xff]
    %v167 = vld [vmem:[#allocation8 + $0x1f8] sm:$0xff]
    %v168 = vld [vmem:[#allocation8 + $0x200] sm:$0xff]
    %v169 = vld [vmem:[#allocation8 + $0x208] sm:$0xff]
    %v170 = vld [vmem:[#allocation8 + $0x210] sm:$0xff]
    %v171 = vld [vmem:[#allocation8 + $0x218] sm:$0xff]
    %v172 = vld [vmem:[#allocation8 + $0x220] sm:$0xff]
    %v173 = vld [vmem:[#allocation8 + $0x228] sm:$0xff]
    %v174 = vld [vmem:[#allocation8 + $0x230] sm:$0xff]
    %v175 = vld [vmem:[#allocation8 + $0x238] sm:$0xff]
    %v176 = vld [vmem:[#allocation8 + $0x240] sm:$0xff]
    %v177 = vld [vmem:[#allocation8 + $0x248] sm:$0xff]
    %v178 = vld [vmem:[#allocation8 + $0x250] sm:$0xff]
    %v179 = vld [vmem:[#allocation8 + $0x258] sm:$0xff]
    %v180 = vld [vmem:[#allocation8 + $0x260] sm:$0xff]
    %v181 = vld [vmem:[#allocation8 + $0x268] sm:$0xff]
    %v182 = vld [vmem:[#allocation8 + $0x270] sm:$0xff]
    %v183 = vld [vmem:[#allocation8 + $0x278] sm:$0xff]
    %v184 = vld [vmem:[#allocation8 + $0x280] sm:$0xff]
    %v185 = vld [vmem:[#allocation8 + $0x288] sm:$0xff]
    %v186 = vld [vmem:[#allocation8 + $0x290] sm:$0xff]
    %v187 = vld [vmem:[#allocation8 + $0x298] sm:$0xff]
    %v188 = vld [vmem:[#allocation8 + $0x2a0] sm:$0xff]
    %v189 = vld [vmem:[#allocation8 + $0x2a8] sm:$0xff]
    %v190 = vld [vmem:[#allocation8 + $0x2b0] sm:$0xff]
    %v191 = vld [vmem:[#allocation8 + $0x2b8] sm:$0xff]
    %v192 = vld [vmem:[#allocation8 + $0x2c0] sm:$0xff]
    %v193 = vld [vmem:[#allocation8 + $0x2c8] sm:$0xff]
    %v194 = vld [vmem:[#allocation8 + $0x2d0] sm:$0xff]
    %v195 = vld [vmem:[#allocation8 + $0x2d8] sm:$0xff]
    %v196 = vld [vmem:[#allocation8 + $0x2e0] sm:$0xff]
    %v197 = vld [vmem:[#allocation8 + $0x2e8] sm:$0xff]
    %v198 = vld [vmem:[#allocation8 + $0x2f0] sm:$0xff]
    %v199 = vld [vmem:[#allocation8 + $0x2f8] sm:$0xff]
    %200 = vmatprep.subr.mxu0 %v105
    %201 = vmatpush1.msra.mxu0 %v104
    %202 = vmatprep.subr.mxu0 %v108
    %203 = vmatpush1.msra.mxu0 %v107
    %204 = vmatprep.subr.mxu0 %v111
    %205 = vmatpush1.msra.mxu0 %v110
    %206 = vmatprep.subr.mxu0 %v114
    %207 = vmatpush1.msra.mxu0 %v113
    %208 = vmatprep.subr.mxu0 %v117
    %209 = vmatpush1.msra.mxu0 %v116
    %210 = vmatprep.subr.mxu0 %v120
    %211 = vmatpush1.msra.mxu0 %v119
    %212 = vmatprep.subr.mxu0 %v123
    %213 = vmatpush1.msra.mxu0 %v122
    %214 = vmatprep.subr.mxu0 %v126
    %215 = vmatpush1.msra.mxu0 %v125
    %216 = vmatprep.subr.mxu0 %v129
    %217 = vmatpush1.msra.mxu0 %v128
    %218 = vmatprep.subr.mxu0 %v132
    %219 = vmatpush1.msra.mxu0 %v131
    %220 = vmatprep.subr.mxu0 %v135
    %221 = vmatpush1.msra.mxu0 %v134
    %222 = vmatprep.subr.mxu0 %v138
    %223 = vmatpush1.msra.mxu0 %v137
    %224 = vmatprep.subr.mxu0 %v141
    %225 = vmatpush1.msra.mxu0 %v140
    %226 = vmatprep.subr.mxu0 %v144
    %227 = vmatpush1.msra.mxu0 %v143
    %228 = vmatprep.subr.mxu0 %v147
    %229 = vmatpush1.msra.mxu0 %v146
    %230 = vmatprep.subr.mxu0 %v150
    %231 = vmatpush1.msra.mxu0 %v149
    %232 = vmatprep.subr.mxu0 %v153
    %233 = vmatpush1.msra.mxu0 %v152
    %234 = vmatprep.subr.mxu0 %v156
    %235 = vmatpush1.msra.mxu0 %v155
    %236 = vmatprep.subr.mxu0 %v159
    %237 = vmatpush1.msra.mxu0 %v158
    %238 = vmatprep.subr.mxu0 %v162
    %239 = vmatpush1.msra.mxu0 %v161
    %240 = vmatprep.subr.mxu0 %v165
    %241 = vmatpush1.msra.mxu0 %v164
    %242 = vmatprep.subr.mxu0 %v168
    %243 = vmatpush1.msra.mxu0 %v167
    %244 = vmatprep.subr.mxu0 %v171
    %245 = vmatpush1.msra.mxu0 %v170
    %246 = vmatprep.subr.mxu0 %v174
    %247 = vmatpush1.msra.mxu0 %v173
    %248 = vmatprep.subr.mxu0 %v177
    %249 = vmatpush1.msra.mxu0 %v176
    %250 = vmatprep.subr.mxu0 %v180
    %251 = vmatpush1.msra.mxu0 %v179
    %252 = vmatprep.subr.mxu0 %v183
    %253 = vmatpush1.msra.mxu0 %v182
    %254 = vmatprep.subr.mxu0 %v186
    %255 = vmatpush1.msra.mxu0 %v185
    %256 = vmatprep.subr.mxu0 %v189
    %257 = vmatpush1.msra.mxu0 %v188
    %258 = vmatprep.subr.mxu0 %v192
    %259 = vmatpush1.msra.mxu0 %v191
    %260 = vmatprep.subr.mxu0 %v195
    %261 = vmatpush1.msra.mxu0 %v194
    %262 = vmatprep.subr.mxu0 %v198
    %263 = vmatpush1.msra.mxu0 %v197
    %264 = vmatprep.mubr.f32.mxu0 %v73
    %265 = vmatmul.mubr.f32.gmra.mrb[0].mxu0 %v72
    %v266 = vpop.f32.mrb[0].mxu0
    %v267 = vadd.f32 0.0, %v266
    %v268 = vpop.f32.mrb[0].mxu0
    %v269 = vadd.f32 0.0, %v268
    %270 = vmatprep.mubr.f32.mxu0 %v75
    %271 = vmatmul.mubr.f32.gmra.mrb[0].mxu0 %v74
    %v272 = vpop.f32.mrb[0].mxu0
    %v273 = vadd.f32 0.0, %v272
    %v274 = vpop.f32.mrb[0].mxu0
    %v275 = vadd.f32 0.0, %v274
    %276 = vmatprep.mubr.f32.mxu0 %v77
    %277 = vmatmul.mubr.f32.gmra.mrb[0].mxu0 %v76
    %v278 = vpop.f32.mrb[0].mxu0
    %v279 = vadd.f32 0.0, %v278
    %v280 = vpop.f32.mrb[0].mxu0
    %v281 = vadd.f32 0.0, %v280
    %282 = vmatprep.mubr.f32.mxu0 %v79
    %283 = vmatmul.mubr.f32.gmra.mrb[0].mxu0 %v78
    %v284 = vpop.f32.mrb[0].mxu0
    %v285 = vadd.f32 0.0, %v284
    %v286 = vpop.f32.mrb[0].mxu0
    %v287 = vadd.f32 0.0, %v286
    %288 = vmatprep.mubr.f32.mxu0 %v81
    %289 = vmatmul.mubr.f32.gmra.mrb[0].mxu0 %v80
    %v290 = vpop.f32.mrb[0].mxu0
    %v291 = vadd.f32 0.0, %v290
    %v292 = vpop.f32.mrb[0].mxu0
    %v293 = vadd.f32 0.0, %v292
    %294 = vmatprep.mubr.f32.mxu0 %v83
    %295 = vmatmul.mubr.f32.gmra.mrb[0].mxu0 %v82
    %v296 = vpop.f32.mrb[0].mxu0
    %v297 = vadd.f32 0.0, %v296
    %v298 = vpop.f32.mrb[0].mxu0
    %v299 = vadd.f32 0.0, %v298
    %300 = vmatprep.mubr.f32.mxu0 %v85
    %301 = vmatmul.mubr.f32.gmra.mrb[0].mxu0 %v84
    %v302 = vpop.f32.mrb[0].mxu0
    %v303 = vadd.f32 0.0, %v302
    %v304 = vpop.f32.mrb[0].mxu0
    %v305 = vadd.f32 0.0, %v304
    %306 = vmatprep.mubr.f32.mxu0 %v87
    %307 = vmatmul.mubr.f32.gmra.mrb[0].mxu0 %v86
    %v308 = vpop.f32.mrb[0].mxu0
    %v309 = vadd.f32 0.0, %v308
    %v310 = vpop.f32.mrb[0].mxu0
    %v311 = vadd.f32 0.0, %v310
    %312 = vmatprep.mubr.f32.mxu0 %v89
    %313 = vmatmul.mubr.f32.gmra.mrb[0].mxu0 %v88
    %v314 = vpop.f32.mrb[0].mxu0
    %v315 = vadd.f32 0.0, %v314
    %v316 = vpop.f32.mrb[0].mxu0
    %v317 = vadd.f32 0.0, %v316
    %318 = vmatprep.mubr.f32.mxu0 %v91
    %319 = vmatmul.mubr.f32.gmra.mrb[0].mxu0 %v90
    %v320 = vpop.f32.mrb[0].mxu0
    %v321 = vadd.f32 0.0, %v320
    %v322 = vpop.f32.mrb[0].mxu0
    %v323 = vadd.f32 0.0, %v322
    %324 = vmatprep.mubr.f32.mxu0 %v93
    %325 = vmatmul.mubr.f32.gmra.mrb[0].mxu0 %v92
    %v326 = vpop.f32.mrb[0].mxu0
    %v327 = vadd.f32 0.0, %v326
    %v328 = vpop.f32.mrb[0].mxu0
    %v329 = vadd.f32 0.0, %v328
    %330 = vmatprep.mubr.f32.mxu0 %v95
    %331 = vmatmul.mubr.f32.gmra.mrb[0].mxu0 %v94
    %v332 = vpop.f32.mrb[0].mxu0
    %v333 = vadd.f32 0.0, %v332
    %v334 = vpop.f32.mrb[0].mxu0
    %v335 = vadd.f32 0.0, %v334
    %336 = vmatprep.mubr.f32.mxu0 %v97
    %337 = vmatmul.mubr.f32.gmra.mrb[0].mxu0 %v96
    %v338 = vpop.f32.mrb[0].mxu0
    %v339 = vadd.f32 0.0, %v338
    %v340 = vpop.f32.mrb[0].mxu0
    %v341 = vadd.f32 0.0, %v340
    %342 = vmatprep.mubr.f32.mxu0 %v99
    %343 = vmatmul.mubr.f32.gmra.mrb[0].mxu0 %v98
    %v344 = vpop.f32.mrb[0].mxu0
    %v345 = vadd.f32 0.0, %v344
    %v346 = vpop.f32.mrb[0].mxu0
    %v347 = vadd.f32 0.0, %v346
    %348 = vmatprep.mubr.f32.mxu0 %v101
    %349 = vmatmul.mubr.f32.gmra.mrb[0].mxu0 %v100
    %v350 = vpop.f32.mrb[0].mxu0
    %v351 = vadd.f32 0.0, %v350
    %v352 = vpop.f32.mrb[0].mxu0
    %v353 = vadd.f32 0.0, %v352
    %354 = vmatprep.mubr.f32.mxu0 %v103
    %355 = vmatmul.mubr.f32.gmra.mrb[0].mxu0 %v102
    %v356 = vpop.f32.mrb[0].mxu0
    %v357 = vadd.f32 0.0, %v356
    %v358 = vpop.f32.mrb[0].mxu0
    %v359 = vadd.f32 0.0, %v358
    %360 = vdwg.mxu0
    %361 = vmatprep.subr.mxu0 0.0
    %362 = vmatpush1.msra.mxu0 %v106
    %363 = vmatprep.subr.mxu0 0.0
    %364 = vmatpush1.msra.mxu0 %v109
    %365 = vmatprep.subr.mxu0 0.0
    %366 = vmatpush1.msra.mxu0 %v112
    %367 = vmatprep.subr.mxu0 0.0
    %368 = vmatpush1.msra.mxu0 %v115
    %369 = vmatprep.subr.mxu0 0.0
    %370 = vmatpush1.msra.mxu0 %v118
    %371 = vmatprep.subr.mxu0 0.0
    %372 = vmatpush1.msra.mxu0 %v121
    %373 = vmatprep.subr.mxu0 0.0
    %374 = vmatpush1.msra.mxu0 %v124
    %375 = vmatprep.subr.mxu0 0.0
    %376 = vmatpush1.msra.mxu0 %v127
    %377 = vmatprep.subr.mxu0 0.0
    %378 = vmatpush1.msra.mxu0 %v130
    %379 = vmatprep.subr.mxu0 0.0
    %380 = vmatpush1.msra.mxu0 %v133
    %381 = vmatprep.subr.mxu0 0.0
    %382 = vmatpush1.msra.mxu0 %v136
    %383 = vmatprep.subr.mxu0 0.0
    %384 = vmatpush1.msra.mxu0 %v139
    %385 = vmatprep.subr.mxu0 0.0
    %386 = vmatpush1.msra.mxu0 %v142
    %387 = vmatprep.subr.mxu0 0.0
    %388 = vmatpush1.msra.mxu0 %v145
    %389 = vmatprep.subr.mxu0 0.0
    %390 = vmatpush1.msra.mxu0 %v148
    %391 = vmatprep.subr.mxu0 0.0
    %392 = vmatpush1.msra.mxu0 %v151
    %393 = vmatprep.subr.mxu0 0.0
    %394 = vmatpush1.msra.mxu0 %v154
    %395 = vmatprep.subr.mxu0 0.0
    %396 = vmatpush1.msra.mxu0 %v157
    %397 = vmatprep.subr.mxu0 0.0
    %398 = vmatpush1.msra.mxu0 %v160
    %399 = vmatprep.subr.mxu0 0.0
    %400 = vmatpush1.msra.mxu0 %v163
    %401 = vmatprep.subr.mxu0 0.0
    %402 = vmatpush1.msra.mxu0 %v166
    %403 = vmatprep.subr.mxu0 0.0
    %404 = vmatpush1.msra.mxu0 %v169
    %405 = vmatprep.subr.mxu0 0.0
    %406 = vmatpush1.msra.mxu0 %v172
    %407 = vmatprep.subr.mxu0 0.0
    %408 = vmatpush1.msra.mxu0 %v175
    %409 = vmatprep.subr.mxu0 0.0
    %410 = vmatpush1.msra.mxu0 %v178
    %411 = vmatprep.subr.mxu0 0.0
    %412 = vmatpush1.msra.mxu0 %v181
    %413 = vmatprep.subr.mxu0 0.0
    %414 = vmatpush1.msra.mxu0 %v184
    %415 = vmatprep.subr.mxu0 0.0
    %416 = vmatpush1.msra.mxu0 %v187
    %417 = vmatprep.subr.mxu0 0.0
    %418 = vmatpush1.msra.mxu0 %v190
    %419 = vmatprep.subr.mxu0 0.0
    %420 = vmatpush1.msra.mxu0 %v193
    %421 = vmatprep.subr.mxu0 0.0
    %422 = vmatpush1.msra.mxu0 %v196
    %423 = vmatprep.subr.mxu0 0.0
    %424 = vmatpush1.msra.mxu0 %v199
    %425 = vmatprep.mubr.f32.mxu0 %v73
    %426 = vmatmul.mubr.f32.gmra.mrb[0].mxu0 %v72
    %v427 = vpop.f32.mrb[0].mxu0
    %v428 = vadd.f32 0.0, %v427
    %v429 = vpop.f32.mrb[0].mxu0
    %430 = vmatprep.mubr.f32.mxu0 %v75
    %431 = vmatmul.mubr.f32.gmra.mrb[0].mxu0 %v74
    %v432 = vpop.f32.mrb[0].mxu0
    %v433 = vadd.f32 0.0, %v432
    %v434 = vpop.f32.mrb[0].mxu0
    %435 = vmatprep.mubr.f32.mxu0 %v77
    %436 = vmatmul.mubr.f32.gmra.mrb[0].mxu0 %v76
    %v437 = vpop.f32.mrb[0].mxu0
    %v438 = vadd.f32 0.0, %v437
    %v439 = vpop.f32.mrb[0].mxu0
    %440 = vmatprep.mubr.f32.mxu0 %v79
    %441 = vmatmul.mubr.f32.gmra.mrb[0].mxu0 %v78
    %v442 = vpop.f32.mrb[0].mxu0
    %v443 = vadd.f32 0.0, %v442
    %v444 = vpop.f32.mrb[0].mxu0
    %445 = vmatprep.mubr.f32.mxu0 %v81
    %446 = vmatmul.mubr.f32.gmra.mrb[0].mxu0 %v80
    %v447 = vpop.f32.mrb[0].mxu0
    %v448 = vadd.f32 0.0, %v447
    %v449 = vpop.f32.mrb[0].mxu0
    %450 = vmatprep.mubr.f32.mxu0 %v83
    %451 = vmatmul.mubr.f32.gmra.mrb[0].mxu0 %v82
    %v452 = vpop.f32.mrb[0].mxu0
    %v453 = vadd.f32 0.0, %v452
    %v454 = vpop.f32.mrb[0].mxu0
    %455 = vmatprep.mubr.f32.mxu0 %v85
    %456 = vmatmul.mubr.f32.gmra.mrb[0].mxu0 %v84
    %v457 = vpop.f32.mrb[0].mxu0
    %v458 = vadd.f32 0.0, %v457
    %v459 = vpop.f32.mrb[0].mxu0
    %460 = vmatprep.mubr.f32.mxu0 %v87
    %461 = vmatmul.mubr.f32.gmra.mrb[0].mxu0 %v86
    %v462 = vpop.f32.mrb[0].mxu0
    %v463 = vadd.f32 0.0, %v462
    %v464 = vpop.f32.mrb[0].mxu0
    %465 = vmatprep.mubr.f32.mxu0 %v89
    %466 = vmatmul.mubr.f32.gmra.mrb[0].mxu0 %v88
    %v467 = vpop.f32.mrb[0].mxu0
    %v468 = vadd.f32 0.0, %v467
    %v469 = vpop.f32.mrb[0].mxu0
    %470 = vmatprep.mubr.f32.mxu0 %v91
    %471 = vmatmul.mubr.f32.gmra.mrb[0].mxu0 %v90
    %v472 = vpop.f32.mrb[0].mxu0
    %v473 = vadd.f32 0.0, %v472
    %v474 = vpop.f32.mrb[0].mxu0
    %475 = vmatprep.mubr.f32.mxu0 %v93
    %476 = vmatmul.mubr.f32.gmra.mrb[0].mxu0 %v92
    %v477 = vpop.f32.mrb[0].mxu0
    %v478 = vadd.f32 0.0, %v477
    %v479 = vpop.f32.mrb[0].mxu0
    %480 = vmatprep.mubr.f32.mxu0 %v95
    %481 = vmatmul.mubr.f32.gmra.mrb[0].mxu0 %v94
    %v482 = vpop.f32.mrb[0].mxu0
    %v483 = vadd.f32 0.0, %v482
    %v484 = vpop.f32.mrb[0].mxu0
    %485 = vmatprep.mubr.f32.mxu0 %v97
    %486 = vmatmul.mubr.f32.gmra.mrb[0].mxu0 %v96
    %v487 = vpop.f32.mrb[0].mxu0
    %v488 = vadd.f32 0.0, %v487
    %v489 = vpop.f32.mrb[0].mxu0
    %490 = vmatprep.mubr.f32.mxu0 %v99
    %491 = vmatmul.mubr.f32.gmra.mrb[0].mxu0 %v98
    %v492 = vpop.f32.mrb[0].mxu0
    %v493 = vadd.f32 0.0, %v492
    %v494 = vpop.f32.mrb[0].mxu0
    %495 = vmatprep.mubr.f32.mxu0 %v101
    %496 = vmatmul.mubr.f32.gmra.mrb[0].mxu0 %v100
    %v497 = vpop.f32.mrb[0].mxu0
    %v498 = vadd.f32 0.0, %v497
    %v499 = vpop.f32.mrb[0].mxu0
    %500 = vmatprep.mubr.f32.mxu0 %v103
    %501 = vmatmul.mubr.f32.gmra.mrb[0].mxu0 %v102
    %v502 = vpop.f32.mrb[0].mxu0
    %v503 = vadd.f32 0.0, %v502
    %v504 = vpop.f32.mrb[0].mxu0
    %505 = vdwg.mxu0
    %v506 = vld [vmem:[#allocation6] sm:$0xff]
    %v507 = vld [vmem:[#allocation6 + $0x8] sm:$0xff]
    %v508 = vld [vmem:[#allocation6 + $0x10] sm:$0xff]
    %v509 = vld [vmem:[#allocation6 + $0x18] sm:$0xff]
    %v510 = vld [vmem:[#allocation6 + $0x20] sm:$0xff]
    %v511 = vld [vmem:[#allocation6 + $0x28] sm:$0xff]
    %v512 = vld [vmem:[#allocation6 + $0x30] sm:$0xff]
    %v513 = vld [vmem:[#allocation6 + $0x38] sm:$0xff]
    %v514 = vld [vmem:[#allocation6 + $0x40] sm:$0xff]
    %v515 = vld [vmem:[#allocation6 + $0x48] sm:$0xff]
    %v516 = vld [vmem:[#allocation6 + $0x50] sm:$0xff]
    %v517 = vld [vmem:[#allocation6 + $0x58] sm:$0xff]
    %v518 = vld [vmem:[#allocation6 + $0x60] sm:$0xff]
    %v519 = vld [vmem:[#allocation6 + $0x68] sm:$0xff]
    %v520 = vld [vmem:[#allocation6 + $0x70] sm:$0xff]
    %v521 = vld [vmem:[#allocation6 + $0x78] sm:$0xff]
    %v522 = vld [vmem:[#allocation6 + $0x80] sm:$0xff]
    %v523 = vld [vmem:[#allocation6 + $0x88] sm:$0xff]
    %v524 = vld [vmem:[#allocation6 + $0x90] sm:$0xff]
    %v525 = vld [vmem:[#allocation6 + $0x98] sm:$0xff]
    %v526 = vld [vmem:[#allocation6 + $0xa0] sm:$0xff]
    %v527 = vld [vmem:[#allocation6 + $0xa8] sm:$0xff]
    %v528 = vld [vmem:[#allocation6 + $0xb0] sm:$0xff]
    %v529 = vld [vmem:[#allocation6 + $0xb8] sm:$0xff]
    %530 = vmatprep.subr.mxu0 %v269
    %531 = vmatpush1.msra.mxu0 %v267
    %532 = vmatprep.subr.mxu0 %v275
    %533 = vmatpush1.msra.mxu0 %v273
    %534 = vmatprep.subr.mxu0 %v281
    %535 = vmatpush1.msra.mxu0 %v279
    %536 = vmatprep.subr.mxu0 %v287
    %537 = vmatpush1.msra.mxu0 %v285
    %538 = vmatprep.subr.mxu0 %v293
    %539 = vmatpush1.msra.mxu0 %v291
    %540 = vmatprep.subr.mxu0 %v299
    %541 = vmatpush1.msra.mxu0 %v297
    %542 = vmatprep.subr.mxu0 %v305
    %543 = vmatpush1.msra.mxu0 %v303
    %544 = vmatprep.subr.mxu0 %v311
    %545 = vmatpush1.msra.mxu0 %v309
    %546 = vmatprep.subr.mxu0 %v317
    %547 = vmatpush1.msra.mxu0 %v315
    %548 = vmatprep.subr.mxu0 %v323
    %549 = vmatpush1.msra.mxu0 %v321
    %550 = vmatprep.subr.mxu0 %v329
    %551 = vmatpush1.msra.mxu0 %v327
    %552 = vmatprep.subr.mxu0 %v335
    %553 = vmatpush1.msra.mxu0 %v333
    %554 = vmatprep.subr.mxu0 %v341
    %555 = vmatpush1.msra.mxu0 %v339
    %556 = vmatprep.subr.mxu0 %v347
    %557 = vmatpush1.msra.mxu0 %v345
    %558 = vmatprep.subr.mxu0 %v353
    %559 = vmatpush1.msra.mxu0 %v351
    %560 = vmatprep.subr.mxu0 %v359
    %561 = vmatpush1.msra.mxu0 %v357
    %562 = vmatprep.subr.mxu0 0.0
    %563 = vmatpush1.msra.mxu0 0.0
    %564 = vmatprep.subr.mxu0 0.0
    %565 = vmatpush1.msra.mxu0 0.0
    %566 = vmatprep.subr.mxu0 0.0
    %567 = vmatpush1.msra.mxu0 0.0
    %568 = vmatprep.subr.mxu0 0.0
    %569 = vmatpush1.msra.mxu0 0.0
    %570 = vmatprep.subr.mxu0 0.0
    %571 = vmatpush1.msra.mxu0 0.0
    %572 = vmatprep.subr.mxu0 0.0
    %573 = vmatpush1.msra.mxu0 0.0
    %574 = vmatprep.subr.mxu0 0.0
    %575 = vmatpush1.msra.mxu0 0.0
    %576 = vmatprep.subr.mxu0 0.0
    %577 = vmatpush1.msra.mxu0 0.0
    %578 = vmatprep.subr.mxu0 0.0
    %579 = vmatpush1.msra.mxu0 0.0
    %580 = vmatprep.subr.mxu0 0.0
    %581 = vmatpush1.msra.mxu0 0.0
    %582 = vmatprep.subr.mxu0 0.0
    %583 = vmatpush1.msra.mxu0 0.0
    %584 = vmatprep.subr.mxu0 0.0
    %585 = vmatpush1.msra.mxu0 0.0
    %586 = vmatprep.subr.mxu0 0.0
    %587 = vmatpush1.msra.mxu0 0.0
    %588 = vmatprep.subr.mxu0 0.0
    %589 = vmatpush1.msra.mxu0 0.0
    %590 = vmatprep.subr.mxu0 0.0
    %591 = vmatpush1.msra.mxu0 0.0
    %592 = vmatprep.subr.mxu0 0.0
    %593 = vmatpush1.msra.mxu0 0.0
    %594 = vmatprep.mubr.f32.mxu0 0.0
    %595 = vmatmul.mubr.f32.gmra.mrb[0].mxu0 %v506
    %v596 = vpop.f32.mrb[0].mxu0
    %v597 = vadd.f32 0.0, %v596
    %v598 = vpop.f32.mrb[0].mxu0
    %v599 = vadd.f32 0.0, %v598
    %600 = vmatprep.mubr.f32.mxu0 0.0
    %601 = vmatmul.mubr.f32.gmra.mrb[0].mxu0 %v507
    %v602 = vpop.f32.mrb[0].mxu0
    %v603 = vadd.f32 0.0, %v602
    %v604 = vpop.f32.mrb[0].mxu0
    %v605 = vadd.f32 0.0, %v604
    %606 = vmatprep.mubr.f32.mxu0 0.0
    %607 = vmatmul.mubr.f32.gmra.mrb[0].mxu0 %v508
    %v608 = vpop.f32.mrb[0].mxu0
    %v609 = vadd.f32 0.0, %v608
    %v610 = vpop.f32.mrb[0].mxu0
    %v611 = vadd.f32 0.0, %v610
    %612 = vmatprep.mubr.f32.mxu0 0.0
    %613 = vmatmul.mubr.f32.gmra.mrb[0].mxu0 %v509
    %v614 = vpop.f32.mrb[0].mxu0
    %v615 = vadd.f32 0.0, %v614
    %v616 = vpop.f32.mrb[0].mxu0
    %v617 = vadd.f32 0.0, %v616
    %618 = vmatprep.mubr.f32.mxu0 0.0
    %619 = vmatmul.mubr.f32.gmra.mrb[0].mxu0 %v510
    %v620 = vpop.f32.mrb[0].mxu0
    %v621 = vadd.f32 0.0, %v620
    %v622 = vpop.f32.mrb[0].mxu0
    %v623 = vadd.f32 0.0, %v622
    %624 = vmatprep.mubr.f32.mxu0 0.0
    %625 = vmatmul.mubr.f32.gmra.mrb[0].mxu0 %v511
    %v626 = vpop.f32.mrb[0].mxu0
    %v627 = vadd.f32 0.0, %v626
    %v628 = vpop.f32.mrb[0].mxu0
    %v629 = vadd.f32 0.0, %v628
    %630 = vmatprep.mubr.f32.mxu0 0.0
    %631 = vmatmul.mubr.f32.gmra.mrb[0].mxu0 %v512
    %v632 = vpop.f32.mrb[0].mxu0
    %v633 = vadd.f32 0.0, %v632
    %v634 = vpop.f32.mrb[0].mxu0
    %v635 = vadd.f32 0.0, %v634
    %636 = vmatprep.mubr.f32.mxu0 0.0
    %637 = vmatmul.mubr.f32.gmra.mrb[0].mxu0 %v513
    %v638 = vpop.f32.mrb[0].mxu0
    %v639 = vadd.f32 0.0, %v638
    %v640 = vpop.f32.mrb[0].mxu0
    %v641 = vadd.f32 0.0, %v640
    %642 = vmatprep.mubr.f32.mxu0 0.0
    %643 = vmatmul.mubr.f32.gmra.mrb[0].mxu0 %v514
    %v644 = vpop.f32.mrb[0].mxu0
    %v645 = vadd.f32 0.0, %v644
    %v646 = vpop.f32.mrb[0].mxu0
    %v647 = vadd.f32 0.0, %v646
    %648 = vmatprep.mubr.f32.mxu0 0.0
    %649 = vmatmul.mubr.f32.gmra.mrb[0].mxu0 %v515
    %v650 = vpop.f32.mrb[0].mxu0
    %v651 = vadd.f32 0.0, %v650
    %v652 = vpop.f32.mrb[0].mxu0
    %v653 = vadd.f32 0.0, %v652
    %654 = vmatprep.mubr.f32.mxu0 0.0
    %655 = vmatmul.mubr.f32.gmra.mrb[0].mxu0 %v516
    %v656 = vpop.f32.mrb[0].mxu0
    %v657 = vadd.f32 0.0, %v656
    %v658 = vpop.f32.mrb[0].mxu0
    %v659 = vadd.f32 0.0, %v658
    %660 = vmatprep.mubr.f32.mxu0 0.0
    %661 = vmatmul.mubr.f32.gmra.mrb[0].mxu0 %v517
    %v662 = vpop.f32.mrb[0].mxu0
    %v663 = vadd.f32 0.0, %v662
    %v664 = vpop.f32.mrb[0].mxu0
    %v665 = vadd.f32 0.0, %v664
    %666 = vmatprep.mubr.f32.mxu0 0.0
    %667 = vmatmul.mubr.f32.gmra.mrb[0].mxu0 %v518
    %v668 = vpop.f32.mrb[0].mxu0
    %v669 = vadd.f32 0.0, %v668
    %v670 = vpop.f32.mrb[0].mxu0
    %v671 = vadd.f32 0.0, %v670
    %672 = vmatprep.mubr.f32.mxu0 0.0
    %673 = vmatmul.mubr.f32.gmra.mrb[0].mxu0 %v519
    %v674 = vpop.f32.mrb[0].mxu0
    %v675 = vadd.f32 0.0, %v674
    %v676 = vpop.f32.mrb[0].mxu0
    %v677 = vadd.f32 0.0, %v676
    %678 = vmatprep.mubr.f32.mxu0 0.0
    %679 = vmatmul.mubr.f32.gmra.mrb[0].mxu0 %v520
    %v680 = vpop.f32.mrb[0].mxu0
    %v681 = vadd.f32 0.0, %v680
    %v682 = vpop.f32.mrb[0].mxu0
    %v683 = vadd.f32 0.0, %v682
    %684 = vmatprep.mubr.f32.mxu0 0.0
    %685 = vmatmul.mubr.f32.gmra.mrb[0].mxu0 %v521
    %v686 = vpop.f32.mrb[0].mxu0
    %v687 = vadd.f32 0.0, %v686
    %v688 = vpop.f32.mrb[0].mxu0
    %v689 = vadd.f32 0.0, %v688
    %690 = vmatprep.mubr.f32.mxu0 0.0
    %691 = vmatmul.mubr.f32.gmra.mrb[0].mxu0 %v522
    %v692 = vpop.f32.mrb[0].mxu0
    %v693 = vadd.f32 0.0, %v692
    %v694 = vpop.f32.mrb[0].mxu0
    %v695 = vadd.f32 0.0, %v694
    %696 = vmatprep.mubr.f32.mxu0 0.0
    %697 = vmatmul.mubr.f32.gmra.mrb[0].mxu0 %v523
    %v698 = vpop.f32.mrb[0].mxu0
    %v699 = vadd.f32 0.0, %v698
    %v700 = vpop.f32.mrb[0].mxu0
    %v701 = vadd.f32 0.0, %v700
    %702 = vmatprep.mubr.f32.mxu0 0.0
    %703 = vmatmul.mubr.f32.gmra.mrb[0].mxu0 %v524
    %v704 = vpop.f32.mrb[0].mxu0
    %v705 = vadd.f32 0.0, %v704
    %v706 = vpop.f32.mrb[0].mxu0
    %v707 = vadd.f32 0.0, %v706
    %708 = vmatprep.mubr.f32.mxu0 0.0
    %709 = vmatmul.mubr.f32.gmra.mrb[0].mxu0 %v525
    %v710 = vpop.f32.mrb[0].mxu0
    %v711 = vadd.f32 0.0, %v710
    %v712 = vpop.f32.mrb[0].mxu0
    %v713 = vadd.f32 0.0, %v712
    %714 = vmatprep.mubr.f32.mxu0 0.0
    %715 = vmatmul.mubr.f32.gmra.mrb[0].mxu0 %v526
    %v716 = vpop.f32.mrb[0].mxu0
    %v717 = vadd.f32 0.0, %v716
    %v718 = vpop.f32.mrb[0].mxu0
    %v719 = vadd.f32 0.0, %v718
    %720 = vmatprep.mubr.f32.mxu0 0.0
    %721 = vmatmul.mubr.f32.gmra.mrb[0].mxu0 %v527
    %v722 = vpop.f32.mrb[0].mxu0
    %v723 = vadd.f32 0.0, %v722
    %v724 = vpop.f32.mrb[0].mxu0
    %v725 = vadd.f32 0.0, %v724
    %726 = vmatprep.mubr.f32.mxu0 0.0
    %727 = vmatmul.mubr.f32.gmra.mrb[0].mxu0 %v528
    %v728 = vpop.f32.mrb[0].mxu0
    %v729 = vadd.f32 0.0, %v728
    %v730 = vpop.f32.mrb[0].mxu0
    %v731 = vadd.f32 0.0, %v730
    %732 = vmatprep.mubr.f32.mxu0 0.0
    %733 = vmatmul.mubr.f32.gmra.mrb[0].mxu0 %v529
    %v734 = vpop.f32.mrb[0].mxu0
    %v735 = vadd.f32 0.0, %v734
    %v736 = vpop.f32.mrb[0].mxu0
    %v737 = vadd.f32 0.0, %v736
    %738 = vdwg.mxu0
    %739 = vmatprep.subr.mxu0 0.0
    %740 = vmatpush1.msra.mxu0 %v428
    %741 = vmatprep.subr.mxu0 0.0
    %742 = vmatpush1.msra.mxu0 %v433
    %743 = vmatprep.subr.mxu0 0.0
    %744 = vmatpush1.msra.mxu0 %v438
    %745 = vmatprep.subr.mxu0 0.0
    %746 = vmatpush1.msra.mxu0 %v443
    %747 = vmatprep.subr.mxu0 0.0
    %748 = vmatpush1.msra.mxu0 %v448
    %749 = vmatprep.subr.mxu0 0.0
    %750 = vmatpush1.msra.mxu0 %v453
    %751 = vmatprep.subr.mxu0 0.0
    %752 = vmatpush1.msra.mxu0 %v458
    %753 = vmatprep.subr.mxu0 0.0
    %754 = vmatpush1.msra.mxu0 %v463
    %755 = vmatprep.subr.mxu0 0.0
    %756 = vmatpush1.msra.mxu0 %v468
    %757 = vmatprep.subr.mxu0 0.0
    %758 = vmatpush1.msra.mxu0 %v473
    %759 = vmatprep.subr.mxu0 0.0
    %760 = vmatpush1.msra.mxu0 %v478
    %761 = vmatprep.subr.mxu0 0.0
    %762 = vmatpush1.msra.mxu0 %v483
    %763 = vmatprep.subr.mxu0 0.0
    %764 = vmatpush1.msra.mxu0 %v488
    %765 = vmatprep.subr.mxu0 0.0
    %766 = vmatpush1.msra.mxu0 %v493
    %767 = vmatprep.subr.mxu0 0.0
    %768 = vmatpush1.msra.mxu0 %v498
    %769 = vmatprep.subr.mxu0 0.0
    %770 = vmatpush1.msra.mxu0 %v503
    %771 = vmatprep.subr.mxu0 0.0
    %772 = vmatpush1.msra.mxu0 0.0
    %773 = vmatprep.subr.mxu0 0.0
    %774 = vmatpush1.msra.mxu0 0.0
    %775 = vmatprep.subr.mxu0 0.0
    %776 = vmatpush1.msra.mxu0 0.0
    %777 = vmatprep.subr.mxu0 0.0
    %778 = vmatpush1.msra.mxu0 0.0
    %779 = vmatprep.subr.mxu0 0.0
    %780 = vmatpush1.msra.mxu0 0.0
    %781 = vmatprep.subr.mxu0 0.0
    %782 = vmatpush1.msra.mxu0 0.0
    %783 = vmatprep.subr.mxu0 0.0
    %784 = vmatpush1.msra.mxu0 0.0
    %785 = vmatprep.subr.mxu0 0.0
    %786 = vmatpush1.msra.mxu0 0.0
    %787 = vmatprep.subr.mxu0 0.0
    %788 = vmatpush1.msra.mxu0 0.0
    %789 = vmatprep.subr.mxu0 0.0
    %790 = vmatpush1.msra.mxu0 0.0
    %791 = vmatprep.subr.mxu0 0.0
    %792 = vmatpush1.msra.mxu0 0.0
    %793 = vmatprep.subr.mxu0 0.0
    %794 = vmatpush1.msra.mxu0 0.0
    %795 = vmatprep.subr.mxu0 0.0
    %796 = vmatpush1.msra.mxu0 0.0
    %797 = vmatprep.subr.mxu0 0.0
    %798 = vmatpush1.msra.mxu0 0.0
    %799 = vmatprep.subr.mxu0 0.0
    %800 = vmatpush1.msra.mxu0 0.0
    %801 = vmatprep.subr.mxu0 0.0
    %802 = vmatpush1.msra.mxu0 0.0
    %803 = vmatprep.mubr.f32.mxu0 0.0
    %804 = vmatmul.mubr.f32.gmra.mrb[0].mxu0 %v506
    %v805 = vpop.f32.mrb[0].mxu0
    %v806 = vadd.f32 0.0, %v805
    %v807 = vpop.f32.mrb[0].mxu0
    %808 = vmatprep.mubr.f32.mxu0 0.0
    %809 = vmatmul.mubr.f32.gmra.mrb[0].mxu0 %v507
    %v810 = vpop.f32.mrb[0].mxu0
    %v811 = vadd.f32 0.0, %v810
    %v812 = vpop.f32.mrb[0].mxu0
    %813 = vmatprep.mubr.f32.mxu0 0.0
    %814 = vmatmul.mubr.f32.gmra.mrb[0].mxu0 %v508
    %v815 = vpop.f32.mrb[0].mxu0
    %v816 = vadd.f32 0.0, %v815
    %v817 = vpop.f32.mrb[0].mxu0
    %818 = vmatprep.mubr.f32.mxu0 0.0
    %819 = vmatmul.mubr.f32.gmra.mrb[0].mxu0 %v509
    %v820 = vpop.f32.mrb[0].mxu0
    %v821 = vadd.f32 0.0, %v820
    %v822 = vpop.f32.mrb[0].mxu0
    %823 = vmatprep.mubr.f32.mxu0 0.0
    %824 = vmatmul.mubr.f32.gmra.mrb[0].mxu0 %v510
    %v825 = vpop.f32.mrb[0].mxu0
    %v826 = vadd.f32 0.0, %v825
    %v827 = vpop.f32.mrb[0].mxu0
    %828 = vmatprep.mubr.f32.mxu0 0.0
    %829 = vmatmul.mubr.f32.gmra.mrb[0].mxu0 %v511
    %v830 = vpop.f32.mrb[0].mxu0
    %v831 = vadd.f32 0.0, %v830
    %v832 = vpop.f32.mrb[0].mxu0
    %833 = vmatprep.mubr.f32.mxu0 0.0
    %834 = vmatmul.mubr.f32.gmra.mrb[0].mxu0 %v512
    %v835 = vpop.f32.mrb[0].mxu0
    %v836 = vadd.f32 0.0, %v835
    %v837 = vpop.f32.mrb[0].mxu0
    %838 = vmatprep.mubr.f32.mxu0 0.0
    %839 = vmatmul.mubr.f32.gmra.mrb[0].mxu0 %v513
    %v840 = vpop.f32.mrb[0].mxu0
    %v841 = vadd.f32 0.0, %v840
    %v842 = vpop.f32.mrb[0].mxu0
    %843 = vmatprep.mubr.f32.mxu0 0.0
    %844 = vmatmul.mubr.f32.gmra.mrb[0].mxu0 %v514
    %v845 = vpop.f32.mrb[0].mxu0
    %v846 = vadd.f32 0.0, %v845
    %v847 = vpop.f32.mrb[0].mxu0
    %848 = vmatprep.mubr.f32.mxu0 0.0
    %849 = vmatmul.mubr.f32.gmra.mrb[0].mxu0 %v515
    %v850 = vpop.f32.mrb[0].mxu0
    %v851 = vadd.f32 0.0, %v850
    %v852 = vpop.f32.mrb[0].mxu0
    %853 = vmatprep.mubr.f32.mxu0 0.0
    %854 = vmatmul.mubr.f32.gmra.mrb[0].mxu0 %v516
    %v855 = vpop.f32.mrb[0].mxu0
    %v856 = vadd.f32 0.0, %v855
    %v857 = vpop.f32.mrb[0].mxu0
    %858 = vmatprep.mubr.f32.mxu0 0.0
    %859 = vmatmul.mubr.f32.gmra.mrb[0].mxu0 %v517
    %v860 = vpop.f32.mrb[0].mxu0
    %v861 = vadd.f32 0.0, %v860
    %v862 = vpop.f32.mrb[0].mxu0
    %863 = vmatprep.mubr.f32.mxu0 0.0
    %864 = vmatmul.mubr.f32.gmra.mrb[0].mxu0 %v518
    %v865 = vpop.f32.mrb[0].mxu0
    %v866 = vadd.f32 0.0, %v865
    %v867 = vpop.f32.mrb[0].mxu0
    %868 = vmatprep.mubr.f32.mxu0 0.0
    %869 = vmatmul.mubr.f32.gmra.mrb[0].mxu0 %v519
    %v870 = vpop.f32.mrb[0].mxu0
    %v871 = vadd.f32 0.0, %v870
    %v872 = vpop.f32.mrb[0].mxu0
    %873 = vmatprep.mubr.f32.mxu0 0.0
    %874 = vmatmul.mubr.f32.gmra.mrb[0].mxu0 %v520
    %v875 = vpop.f32.mrb[0].mxu0
    %v876 = vadd.f32 0.0, %v875
    %v877 = vpop.f32.mrb[0].mxu0
    %878 = vmatprep.mubr.f32.mxu0 0.0
    %879 = vmatmul.mubr.f32.gmra.mrb[0].mxu0 %v521
    %v880 = vpop.f32.mrb[0].mxu0
    %v881 = vadd.f32 0.0, %v880
    %v882 = vpop.f32.mrb[0].mxu0
    %883 = vmatprep.mubr.f32.mxu0 0.0
    %884 = vmatmul.mubr.f32.gmra.mrb[0].mxu0 %v522
    %v885 = vpop.f32.mrb[0].mxu0
    %v886 = vadd.f32 0.0, %v885
    %v887 = vpop.f32.mrb[0].mxu0
    %888 = vmatprep.mubr.f32.mxu0 0.0
    %889 = vmatmul.mubr.f32.gmra.mrb[0].mxu0 %v523
    %v890 = vpop.f32.mrb[0].mxu0
    %v891 = vadd.f32 0.0, %v890
    %v892 = vpop.f32.mrb[0].mxu0
    %893 = vmatprep.mubr.f32.mxu0 0.0
    %894 = vmatmul.mubr.f32.gmra.mrb[0].mxu0 %v524
    %v895 = vpop.f32.mrb[0].mxu0
    %v896 = vadd.f32 0.0, %v895
    %v897 = vpop.f32.mrb[0].mxu0
    %898 = vmatprep.mubr.f32.mxu0 0.0
    %899 = vmatmul.mubr.f32.gmra.mrb[0].mxu0 %v525
    %v900 = vpop.f32.mrb[0].mxu0
    %v901 = vadd.f32 0.0, %v900
    %v902 = vpop.f32.mrb[0].mxu0
    %903 = vmatprep.mubr.f32.mxu0 0.0
    %904 = vmatmul.mubr.f32.gmra.mrb[0].mxu0 %v526
    %v905 = vpop.f32.mrb[0].mxu0
    %v906 = vadd.f32 0.0, %v905
    %v907 = vpop.f32.mrb[0].mxu0
    %908 = vmatprep.mubr.f32.mxu0 0.0
    %909 = vmatmul.mubr.f32.gmra.mrb[0].mxu0 %v527
    %v910 = vpop.f32.mrb[0].mxu0
    %v911 = vadd.f32 0.0, %v910
    %v912 = vpop.f32.mrb[0].mxu0
    %913 = vmatprep.mubr.f32.mxu0 0.0
    %914 = vmatmul.mubr.f32.gmra.mrb[0].mxu0 %v528
    %v915 = vpop.f32.mrb[0].mxu0
    %v916 = vadd.f32 0.0, %v915
    %v917 = vpop.f32.mrb[0].mxu0
    %918 = vmatprep.mubr.f32.mxu0 0.0
    %919 = vmatmul.mubr.f32.gmra.mrb[0].mxu0 %v529
    %v920 = vpop.f32.mrb[0].mxu0
    %v921 = vadd.f32 0.0, %v920
    %v922 = vpop.f32.mrb[0].mxu0
    %923 = vdwg.mxu0
    %s924 = sld [smem:[#allocation9]]
    %s925 = sld [smem:[#allocation9 + $0x1]]
    %s926 = sld [smem:[#allocation9 + $0x2]]
    %s927 = sld [smem:[#allocation9 + $0x3]]
    %s928 = sld [smem:[#allocation9 + $0x4]]
    %s929 = sld [smem:[#allocation9 + $0x5]]
    %s930 = sld [smem:[#allocation9 + $0x6]]
    %s931 = sld [smem:[#allocation9 + $0x7]]
    %s932 = sld [smem:[#allocation9 + $0x8]]
    %s933 = sld [smem:[#allocation9 + $0x9]]
    %s934 = sld [smem:[#allocation9 + $0xa]]
    %s935 = sld [smem:[#allocation9 + $0xb]]
    %s936 = sld [smem:[#allocation9 + $0xc]]
    %s937 = sld [smem:[#allocation9 + $0xd]]
    %s938 = sld [smem:[#allocation9 + $0xe]]
    %s939 = sld [smem:[#allocation9 + $0xf]]
    %s940 = sld [smem:[#allocation9 + $0x10]]
    %s941 = sld [smem:[#allocation9 + $0x11]]
    %s942 = sld [smem:[#allocation9 + $0x12]]
    %s943 = sld [smem:[#allocation9 + $0x13]]
    %s944 = sld [smem:[#allocation9 + $0x14]]
    %s945 = sld [smem:[#allocation9 + $0x15]]
    %s946 = sld [smem:[#allocation9 + $0x16]]
    %s947 = sld [smem:[#allocation9 + $0x17]]
    %s948 = sld [smem:[#allocation9 + $0x18]]
    %s949 = sld [smem:[#allocation9 + $0x19]]
    %s950 = sld [smem:[#allocation9 + $0x1a]]
    %s951 = sld [smem:[#allocation9 + $0x1b]]
    %s952 = sld [smem:[#allocation9 + $0x1c]]
    %s953 = sld [smem:[#allocation9 + $0x1d]]
    %s954 = sld [smem:[#allocation9 + $0x1e]]
    %s955 = sld [smem:[#allocation9 + $0x1f]]
    %s956 = sld [smem:[#allocation9 + $0x20]]
    %s957 = sld [smem:[#allocation9 + $0x21]]
    %s958 = sld [smem:[#allocation9 + $0x22]]
    %s959 = sld [smem:[#allocation9 + $0x23]]
    %v960 = vstv %s924
    %v961 = vmul.f32 %v960, %v597
    %v962 = vmul.f32 %v960, %v603
    %v963 = vadd.f32 %v961, 0.0
    %v964 = vadd.f32 %v962, 0.0
    %v965 = vstv %s942
    %v966 = vmul.f32 %v965, %v597
    %v967 = vmul.f32 %v965, %v603
    %v968 = vadd.f32 %v966, 0.0
    %v969 = vadd.f32 %v967, 0.0
    %v970 = vstv %s925
    %v971 = vmul.f32 %v970, %v599
    %v972 = vmul.f32 %v970, %v605
    %v973 = vadd.f32 %v963, %v971
    %v974 = vadd.f32 %v964, %v972
    %v975 = vstv %s943
    %v976 = vmul.f32 %v975, %v599
    %v977 = vmul.f32 %v975, %v605
    %v978 = vadd.f32 %v968, %v976
    %v979 = vadd.f32 %v969, %v977
    %v980 = vstv %s926
    %v981 = vmul.f32 %v980, %v806
    %v982 = vmul.f32 %v980, %v811
    %v983 = vadd.f32 %v973, %v981
    %v984 = vadd.f32 %v974, %v982
    %v985 = vstv %s944
    %v986 = vmul.f32 %v985, %v806
    %v987 = vmul.f32 %v985, %v811
    %v988 = vadd.f32 %v978, %v986
    %v989 = vadd.f32 %v979, %v987
    %v990 = vstv %s927
    %v991 = vmul.f32 %v990, %v609
    %v992 = vmul.f32 %v990, %v615
    %v993 = vadd.f32 %v983, %v991
    %v994 = vadd.f32 %v984, %v992
    %v995 = vstv %s945
    %v996 = vmul.f32 %v995, %v609
    %v997 = vmul.f32 %v995, %v615
    %v998 = vadd.f32 %v988, %v996
    %v999 = vadd.f32 %v989, %v997
    %v1000 = vstv %s928
    %v1001 = vmul.f32 %v1000, %v611
    %v1002 = vmul.f32 %v1000, %v617
    %v1003 = vadd.f32 %v993, %v1001
    %v1004 = vadd.f32 %v994, %v1002
    %v1005 = vstv %s946
    %v1006 = vmul.f32 %v1005, %v611
    %v1007 = vmul.f32 %v1005, %v617
    %v1008 = vadd.f32 %v998, %v1006
    %v1009 = vadd.f32 %v999, %v1007
    %v1010 = vstv %s929
    %v1011 = vmul.f32 %v1010, %v816
    %v1012 = vmul.f32 %v1010, %v821
    %v1013 = vadd.f32 %v1003, %v1011
    %v1014 = vadd.f32 %v1004, %v1012
    %v1015 = vstv %s947
    %v1016 = vmul.f32 %v1015, %v816
    %v1017 = vmul.f32 %v1015, %v821
    %v1018 = vadd.f32 %v1008, %v1016
    %v1019 = vadd.f32 %v1009, %v1017
    %v1020 = vstv %s930
    %v1021 = vmul.f32 %v1020, %v621
    %v1022 = vmul.f32 %v1020, %v627
    %v1023 = vadd.f32 %v1013, %v1021
    %v1024 = vadd.f32 %v1014, %v1022
    %v1025 = vstv %s948
    %v1026 = vmul.f32 %v1025, %v621
    %v1027 = vmul.f32 %v1025, %v627
    %v1028 = vadd.f32 %v1018, %v1026
    %v1029 = vadd.f32 %v1019, %v1027
    %v1030 = vstv %s931
    %v1031 = vmul.f32 %v1030, %v623
    %v1032 = vmul.f32 %v1030, %v629
    %v1033 = vadd.f32 %v1023, %v1031
    %v1034 = vadd.f32 %v1024, %v1032
    %v1035 = vstv %s949
    %v1036 = vmul.f32 %v1035, %v623
    %v1037 = vmul.f32 %v1035, %v629
    %v1038 = vadd.f32 %v1028, %v1036
    %v1039 = vadd.f32 %v1029, %v1037
    %v1040 = vstv %s932
    %v1041 = vmul.f32 %v1040, %v826
    %v1042 = vmul.f32 %v1040, %v831
    %v1043 = vadd.f32 %v1033, %v1041
    %v1044 = vadd.f32 %v1034, %v1042
    %v1045 = vstv %s950
    %v1046 = vmul.f32 %v1045, %v826
    %v1047 = vmul.f32 %v1045, %v831
    %v1048 = vadd.f32 %v1038, %v1046
    %v1049 = vadd.f32 %v1039, %v1047
    %v1050 = vstv %s933
    %v1051 = vmul.f32 %v1050, %v633
    %v1052 = vmul.f32 %v1050, %v639
    %v1053 = vadd.f32 %v1043, %v1051
    %v1054 = vadd.f32 %v1044, %v1052
    %v1055 = vstv %s951
    %v1056 = vmul.f32 %v1055, %v633
    %v1057 = vmul.f32 %v1055, %v639
    %v1058 = vadd.f32 %v1048, %v1056
    %v1059 = vadd.f32 %v1049, %v1057
    %v1060 = vstv %s934
    %v1061 = vmul.f32 %v1060, %v635
    %v1062 = vmul.f32 %v1060, %v641
    %v1063 = vadd.f32 %v1053, %v1061
    %v1064 = vadd.f32 %v1054, %v1062
    %v1065 = vstv %s952
    %v1066 = vmul.f32 %v1065, %v635
    %v1067 = vmul.f32 %v1065, %v641
    %v1068 = vadd.f32 %v1058, %v1066
    %v1069 = vadd.f32 %v1059, %v1067
    %v1070 = vstv %s935
    %v1071 = vmul.f32 %v1070, %v836
    %v1072 = vmul.f32 %v1070, %v841
    %v1073 = vadd.f32 %v1063, %v1071
    %v1074 = vadd.f32 %v1064, %v1072
    %v1075 = vstv %s953
    %v1076 = vmul.f32 %v1075, %v836
    %v1077 = vmul.f32 %v1075, %v841
    %v1078 = vadd.f32 %v1068, %v1076
    %v1079 = vadd.f32 %v1069, %v1077
    %v1080 = vstv %s936
    %v1081 = vmul.f32 %v1080, %v645
    %v1082 = vmul.f32 %v1080, %v651
    %v1083 = vadd.f32 %v1073, %v1081
    %v1084 = vadd.f32 %v1074, %v1082
    %v1085 = vstv %s954
    %v1086 = vmul.f32 %v1085, %v645
    %v1087 = vmul.f32 %v1085, %v651
    %v1088 = vadd.f32 %v1078, %v1086
    %v1089 = vadd.f32 %v1079, %v1087
    %v1090 = vstv %s937
    %v1091 = vmul.f32 %v1090, %v647
    %v1092 = vmul.f32 %v1090, %v653
    %v1093 = vadd.f32 %v1083, %v1091
    %v1094 = vadd.f32 %v1084, %v1092
    %v1095 = vstv %s955
    %v1096 = vmul.f32 %v1095, %v647
    %v1097 = vmul.f32 %v1095, %v653
    %v1098 = vadd.f32 %v1088, %v1096
    %v1099 = vadd.f32 %v1089, %v1097
    %v1100 = vstv %s938
    %v1101 = vmul.f32 %v1100, %v846
    %v1102 = vmul.f32 %v1100, %v851
    %v1103 = vadd.f32 %v1093, %v1101
    %v1104 = vadd.f32 %v1094, %v1102
    %v1105 = vstv %s956
    %v1106 = vmul.f32 %v1105, %v846
    %v1107 = vmul.f32 %v1105, %v851
    %v1108 = vadd.f32 %v1098, %v1106
    %v1109 = vadd.f32 %v1099, %v1107
    %v1110 = vstv %s939
    %v1111 = vmul.f32 %v1110, %v657
    %v1112 = vmul.f32 %v1110, %v663
    %v1113 = vadd.f32 %v1103, %v1111
    %v1114 = vadd.f32 %v1104, %v1112
    %v1115 = vstv %s957
    %v1116 = vmul.f32 %v1115, %v657
    %v1117 = vmul.f32 %v1115, %v663
    %v1118 = vadd.f32 %v1108, %v1116
    %v1119 = vadd.f32 %v1109, %v1117
    %v1120 = vstv %s940
    %v1121 = vmul.f32 %v1120, %v659
    %v1122 = vmul.f32 %v1120, %v665
    %v1123 = vadd.f32 %v1113, %v1121
    %v1124 = vadd.f32 %v1114, %v1122
    %v1125 = vstv %s958
    %v1126 = vmul.f32 %v1125, %v659
    %v1127 = vmul.f32 %v1125, %v665
    %v1128 = vadd.f32 %v1118, %v1126
    %v1129 = vadd.f32 %v1119, %v1127
    %v1130 = vstv %s941
    %v1131 = vmul.f32 %v1130, %v856
    %v1132 = vmul.f32 %v1130, %v861
    %v1133 = vadd.f32 %v1123, %v1131
    %v1134 = vadd.f32 %v1124, %v1132
    %v1135 = vstv %s959
    %v1136 = vmul.f32 %v1135, %v856
    %v1137 = vmul.f32 %v1135, %v861
    %v1138 = vadd.f32 %v1128, %v1136
    %v1139 = vadd.f32 %v1129, %v1137
    %1140 = vst [vmem:[#allocation10] sm:$0xff] %v1133
    %1141 = vst [vmem:[#allocation10 + $0x8] sm:$0xff] %v1134
    %s1142 = scalar_lea.vmem [#allocation10], 16
    %1143 = vst [vmem:[%s1142] sm:$0xff] %v1138
    %1144 = vst [vmem:[%s1142 + $0x8] sm:$0xff] %v1139
    %v1145 = vmul.f32 %v960, %v669
    %v1146 = vmul.f32 %v960, %v675
    %v1147 = vadd.f32 %v1145, 0.0
    %v1148 = vadd.f32 %v1146, 0.0
    %v1149 = vmul.f32 %v965, %v669
    %v1150 = vmul.f32 %v965, %v675
    %v1151 = vadd.f32 %v1149, 0.0
    %v1152 = vadd.f32 %v1150, 0.0
    %v1153 = vmul.f32 %v970, %v671
    %v1154 = vmul.f32 %v970, %v677
    %v1155 = vadd.f32 %v1147, %v1153
    %v1156 = vadd.f32 %v1148, %v1154
    %v1157 = vmul.f32 %v975, %v671
    %v1158 = vmul.f32 %v975, %v677
    %v1159 = vadd.f32 %v1151, %v1157
    %v1160 = vadd.f32 %v1152, %v1158
    %v1161 = vmul.f32 %v980, %v866
    %v1162 = vmul.f32 %v980, %v871
    %v1163 = vadd.f32 %v1155, %v1161
    %v1164 = vadd.f32 %v1156, %v1162
    %v1165 = vmul.f32 %v985, %v866
    %v1166 = vmul.f32 %v985, %v871
    %v1167 = vadd.f32 %v1159, %v1165
    %v1168 = vadd.f32 %v1160, %v1166
    %v1169 = vmul.f32 %v990, %v681
    %v1170 = vmul.f32 %v990, %v687
    %v1171 = vadd.f32 %v1163, %v1169
    %v1172 = vadd.f32 %v1164, %v1170
    %v1173 = vmul.f32 %v995, %v681
    %v1174 = vmul.f32 %v995, %v687
    %v1175 = vadd.f32 %v1167, %v1173
    %v1176 = vadd.f32 %v1168, %v1174
    %v1177 = vmul.f32 %v1000, %v683
    %v1178 = vmul.f32 %v1000, %v689
    %v1179 = vadd.f32 %v1171, %v1177
    %v1180 = vadd.f32 %v1172, %v1178
    %v1181 = vmul.f32 %v1005, %v683
    %v1182 = vmul.f32 %v1005, %v689
    %v1183 = vadd.f32 %v1175, %v1181
    %v1184 = vadd.f32 %v1176, %v1182
    %v1185 = vmul.f32 %v1010, %v876
    %v1186 = vmul.f32 %v1010, %v881
    %v1187 = vadd.f32 %v1179, %v1185
    %v1188 = vadd.f32 %v1180, %v1186
    %v1189 = vmul.f32 %v1015, %v876
    %v1190 = vmul.f32 %v1015, %v881
    %v1191 = vadd.f32 %v1183, %v1189
    %v1192 = vadd.f32 %v1184, %v1190
    %v1193 = vmul.f32 %v1020, %v693
    %v1194 = vmul.f32 %v1020, %v699
    %v1195 = vadd.f32 %v1187, %v1193
    %v1196 = vadd.f32 %v1188, %v1194
    %v1197 = vmul.f32 %v1025, %v693
    %v1198 = vmul.f32 %v1025, %v699
    %v1199 = vadd.f32 %v1191, %v1197
    %v1200 = vadd.f32 %v1192, %v1198
    %v1201 = vmul.f32 %v1030, %v695
    %v1202 = vmul.f32 %v1030, %v701
    %v1203 = vadd.f32 %v1195, %v1201
    %v1204 = vadd.f32 %v1196, %v1202
    %v1205 = vmul.f32 %v1035, %v695
    %v1206 = vmul.f32 %v1035, %v701
    %v1207 = vadd.f32 %v1199, %v1205
    %v1208 = vadd.f32 %v1200, %v1206
    %v1209 = vmul.f32 %v1040, %v886
    %v1210 = vmul.f32 %v1040, %v891
    %v1211 = vadd.f32 %v1203, %v1209
    %v1212 = vadd.f32 %v1204, %v1210
    %v1213 = vmul.f32 %v1045, %v886
    %v1214 = vmul.f32 %v1045, %v891
    %v1215 = vadd.f32 %v1207, %v1213
    %v1216 = vadd.f32 %v1208, %v1214
    %v1217 = vmul.f32 %v1050, %v705
    %v1218 = vmul.f32 %v1050, %v711
    %v1219 = vadd.f32 %v1211, %v1217
    %v1220 = vadd.f32 %v1212, %v1218
    %v1221 = vmul.f32 %v1055, %v705
    %v1222 = vmul.f32 %v1055, %v711
    %v1223 = vadd.f32 %v1215, %v1221
    %v1224 = vadd.f32 %v1216, %v1222
    %v1225 = vmul.f32 %v1060, %v707
    %v1226 = vmul.f32 %v1060, %v713
    %v1227 = vadd.f32 %v1219, %v1225
    %v1228 = vadd.f32 %v1220, %v1226
    %v1229 = vmul.f32 %v1065, %v707
    %v1230 = vmul.f32 %v1065, %v713
    %v1231 = vadd.f32 %v1223, %v1229
    %v1232 = vadd.f32 %v1224, %v1230
    %v1233 = vmul.f32 %v1070, %v896
    %v1234 = vmul.f32 %v1070, %v901
    %v1235 = vadd.f32 %v1227, %v1233
    %v1236 = vadd.f32 %v1228, %v1234
    %v1237 = vmul.f32 %v1075, %v896
    %v1238 = vmul.f32 %v1075, %v901
    %v1239 = vadd.f32 %v1231, %v1237
    %v1240 = vadd.f32 %v1232, %v1238
    %v1241 = vmul.f32 %v1080, %v717
    %v1242 = vmul.f32 %v1080, %v723
    %v1243 = vadd.f32 %v1235, %v1241
    %v1244 = vadd.f32 %v1236, %v1242
    %v1245 = vmul.f32 %v1085, %v717
    %v1246 = vmul.f32 %v1085, %v723
    %v1247 = vadd.f32 %v1239, %v1245
    %v1248 = vadd.f32 %v1240, %v1246
    %v1249 = vmul.f32 %v1090, %v719
    %v1250 = vmul.f32 %v1090, %v725
    %v1251 = vadd.f32 %v1243, %v1249
    %v1252 = vadd.f32 %v1244, %v1250
    %v1253 = vmul.f32 %v1095, %v719
    %v1254 = vmul.f32 %v1095, %v725
    %v1255 = vadd.f32 %v1247, %v1253
    %v1256 = vadd.f32 %v1248, %v1254
    %v1257 = vmul.f32 %v1100, %v906
    %v1258 = vmul.f32 %v1100, %v911
    %v1259 = vadd.f32 %v1251, %v1257
    %v1260 = vadd.f32 %v1252, %v1258
    %v1261 = vmul.f32 %v1105, %v906
    %v1262 = vmul.f32 %v1105, %v911
    %v1263 = vadd.f32 %v1255, %v1261
    %v1264 = vadd.f32 %v1256, %v1262
    %v1265 = vmul.f32 %v1110, %v729
    %v1266 = vmul.f32 %v1110, %v735
    %v1267 = vadd.f32 %v1259, %v1265
    %v1268 = vadd.f32 %v1260, %v1266
    %v1269 = vmul.f32 %v1115, %v729
    %v1270 = vmul.f32 %v1115, %v735
    %v1271 = vadd.f32 %v1263, %v1269
    %v1272 = vadd.f32 %v1264, %v1270
    %v1273 = vmul.f32 %v1120, %v731
    %v1274 = vmul.f32 %v1120, %v737
    %v1275 = vadd.f32 %v1267, %v1273
    %v1276 = vadd.f32 %v1268, %v1274
    %v1277 = vmul.f32 %v1125, %v731
    %v1278 = vmul.f32 %v1125, %v737
    %v1279 = vadd.f32 %v1271, %v1277
    %v1280 = vadd.f32 %v1272, %v1278
    %v1281 = vmul.f32 %v1130, %v916
    %v1282 = vmul.f32 %v1130, %v921
    %v1283 = vadd.f32 %v1275, %v1281
    %v1284 = vadd.f32 %v1276, %v1282
    %v1285 = vmul.f32 %v1135, %v916
    %v1286 = vmul.f32 %v1135, %v921
    %v1287 = vadd.f32 %v1279, %v1285
    %v1288 = vadd.f32 %v1280, %v1286
    %s1289 = scalar_lea.vmem [#allocation10], 32
    %1290 = vst [vmem:[%s1289] sm:$0xff] %v1283
    %1291 = vst [vmem:[%s1289 + $0x8] sm:$0xff] %v1284
    %s1292 = scalar_lea.vmem [#allocation10], 48
    %1293 = vst [vmem:[%s1292] sm:$0xff] %v1287
    %1294 = vst [vmem:[%s1292 + $0x8] sm:$0xff] %v1288
    // Predicated region
    $region34: #{tpu_custom_call.1} parent=1 // pred_check
      _
    $region35: #{tpu_custom_call.1} parent=1 // pred_check_branch
      %1296 = sbr.rel (0) target = $region37
    $region36: #{tpu_custom_call.1} parent=1 // pred_region
      %s1298 = ssub.s32 1024, 1024
      %1299 = vsyncadd [#allocation4], %s1298
      %s1300 = sshll.u32 [#allocation10], 4
      %s1301 = int_to_ptr.vmem [resolvable:$true] %s1300
      %1306 = dma.vmem_to_hbm [thread:$0]  %s1301, 1024, %s4, [#allocation4], 128, 128, 8
    $region37: #{tpu_custom_call.1} parent=1 // pred_fallthru
      _
    // Predicated region
    $region38: #{tpu_custom_call.1} parent=1 // pred_check
      _
    $region39: #{tpu_custom_call.1} parent=1 // pred_check_branch
      %1308 = sbr.rel (0) target = $region41
    $region40: #{tpu_custom_call.1} parent=1 // pred_region
      %1309 = dma.done [#allocation4], 1024
    $region41: #{tpu_custom_call.1} parent=1 // pred_fallthru
      _
    %1310 = vsyncpa [#allocation3], 1
    %1311 = vsyncpa [#allocation7], 1
    %1312 = vsyncpa [#allocation4], 1
    %1313 = vsyncpa [#allocation5], 1

</llo_original>
